<compile_context>
chip_gen: v5e
topology: v5e:2x2
jax: 0.10.0
libtpu: 0.0.40
codegen_flags: <defaults>
</compile_context>

<pallas_src>
import math
import jax
import jax.numpy as jnp
import numpy as np
from jax.experimental import pallas as pl
from jax.experimental.pallas import tpu as pltpu

D_MODEL = 32
D_FF = 64
HEADS = 4
N_LAYERS = 2
LABEL_CLASS = 3          # >1 so the PyTorch squeeze(-1) is a no-op (matches module usage)
EPS = 1e-6
NEG_INF = -1e18


def _layer_norm(x, g, b):
    mean = jnp.mean(x, axis=-1, keepdims=True)
    var = jnp.mean(jnp.square(x - mean), axis=-1, keepdims=True)
    return (x - mean) * jax.lax.rsqrt(var + EPS) * g + b


def _gelu(x):
    return 0.5 * x * (1.0 + jnp.tanh(math.sqrt(2.0 / math.pi) * (x + 0.044715 * x * x * x)))


def ext_encoder_kernel(
    x_ref, mcol_ref, pe_ref, addm_ref, hmask_ref, blk_ref,
    wq_ref, bq_ref, wk_ref, bk_ref, wv_ref, bv_ref, wo_ref, bo_ref,
    ln1_g_ref, ln1_b_ref,
    w1_ref, b1_ref, w2_ref, b2_ref, ff_g_ref, ff_b_ref,
    fin_g_ref, fin_b_ref, wcls_ref, bcls_ref,
    out_ref,
):
    T, d = x_ref.shape                 # (B*n, d_model): whole batch flattened into rows
    mcol = mcol_ref[...]               # (T, 1)     1.0 = valid sentence
    addm = addm_ref[...]               # (T, H*T)   additive key mask (0 or -1e18)
    hmask = hmask_ref[...]             # (H, 1, d)  per-head lane mask
    blk = blk_ref[...]                 # (H*T, H*T) block-diagonal ones (softmax groups)
    x = x_ref[...] * mcol + pe_ref[...]

    for li in range(N_LAYERS):
        xn = _layer_norm(x, ln1_g_ref[li], ln1_b_ref[li]) if li != 0 else x

        # ---- Q/K/V projections: three N=32 matmuls, default MXU precision,
        #      1/sqrt(d_head) already folded into wq/bq at parameter-load time ----
        q = jnp.dot(xn, wq_ref[li], preferred_element_type=jnp.float32) + bq_ref[li]
        k = jnp.dot(xn, wk_ref[li], preferred_element_type=jnp.float32) + bk_ref[li]
        v = jnp.dot(xn, wv_ref[li], preferred_element_type=jnp.float32) + bv_ref[li]

        # ---- attention as ONE block-matmul pair over all (batch, head) pairs ----
        # Heads live on the KEY row axis: K_big/V_big are (H*T, d), row h*T + t being
        # key t lane-masked to head h.  Scores use the full-d contraction (masked lanes
        # contribute 0, same MXU pass count as a dh-long contraction); the context
        # matmul's contraction reassembles the per-head dh-slices (head "concat") for
        # free because lane e only receives head (e // dh)'s block of V_big.
        k_big = (k[None, :, :] * hmask).reshape(HEADS * T, d)
        v_big = (v[None, :, :] * hmask).reshape(HEADS * T, d)

        s = jnp.einsum('id,zd->iz', q, k_big,
                       preferred_element_type=jnp.float32)          # (T, H*T)
        s = s + addm                                # key padding + cross-batch mask
        p = jnp.exp(s - jnp.max(s, axis=-1, keepdims=True))
        # per-(head, batch) softmax denominator via a block-diagonal ones matmul;
        # fully-masked cross-batch blocks sum to exactly 0 -> clamp to avoid 0*inf.
        l = jnp.dot(p, blk, preferred_element_type=jnp.float32)
        a = p * pl.reciprocal(jnp.maximum(l, 1e-20), approx=True)
        ctx = jnp.dot(a, v_big, preferred_element_type=jnp.float32)  # (T, d)

        ctx = jnp.dot(ctx, wo_ref[li], preferred_element_type=jnp.float32) + bo_ref[li]
        out = ctx + x                                                # residual

        # ---- positionwise feed-forward (pre-LN, GELU, residual) ----
        fin = _layer_norm(out, ff_g_ref[li], ff_b_ref[li])
        inter = _gelu(jnp.dot(fin, w1_ref[li],
                              preferred_element_type=jnp.float32) + b1_ref[li])
        ffo = jnp.dot(inter, w2_ref[li],
                      preferred_element_type=jnp.float32) + b2_ref[li]
        x = ffo + out

    # ---- final LayerNorm + classifier head + output mask (single store) ----
    x = _layer_norm(x, fin_g_ref[...], fin_b_ref[...])
    scores = jnp.dot(x, wcls_ref[...], preferred_element_type=jnp.float32) + bcls_ref[...]
    out_ref[...] = scores * mcol


def _full_spec(a):
    nd = a.ndim
    return pl.BlockSpec(a.shape, lambda i, nd=nd: (0,) * nd)


def prepare_params(P, pe, B, n):
    """One-time (parameter-load-time) preprocessing, hoisted out of the call path."""
    d = D_MODEL
    dh = d // HEADS
    T = B * n
    Z = HEADS * T
    scale = 1.0 / math.sqrt(dh)

    PP = dict(P)
    PP['wq'] = P['wq'] * scale          # fold 1/sqrt(d_head) into the Q projection
    PP['bq'] = P['bq'] * scale
    # per-head lane mask: hmask[h, 0, e] = 1 iff lane e belongs to head h
    PP['hmask'] = (jnp.arange(d)[None, None, :] // dh
                   == jnp.arange(HEADS)[:, None, None]).astype(jnp.float32)
    PP['pe_t'] = jnp.tile(pe, (B, 1))                      # (T, d)
    # block-diagonal ones: softmax normalization groups = head blocks of width T
    zi = jnp.arange(Z)
    PP['blk'] = (zi[:, None] // T == zi[None, :] // T).astype(jnp.float32)   # (Z, Z)
    # static index tables used to build the runtime key mask in the wrapper
    PP['_row_batch'] = jnp.arange(T) // n                  # (T,)  query row -> batch
    PP['_col_batch'] = (zi % T) // n                       # (Z,)  key column -> batch
    PP['_col_pos'] = (zi % T) % n                          # (Z,)  key column -> position
    return PP


def ext_transformer_encoder(top_vecs, mask_bool, PP):
    B, n, d = top_vecs.shape
    T = B * n
    Z = HEADS * T

    x2 = top_vecs.reshape(T, d)                            # flatten batch into rows
    mcol = mask_bool.astype(jnp.float32).reshape(T, 1)

    # Additive key mask (T, Z): column z = h*T + (b'*n + m) is attendable by query
    # row b*n + i iff b' == b (same batch) and sentence m of batch b' is valid.
    key_valid = mask_bool[PP['_col_batch'], PP['_col_pos']]                  # (Z,)
    same_batch = PP['_row_batch'][:, None] == PP['_col_batch'][None, :]      # (T, Z)
    addmask = jnp.where(same_batch & key_valid[None, :], 0.0, NEG_INF
                        ).astype(jnp.float32)

    inputs = [x2, mcol, PP['pe_t'], addmask, PP['hmask'], PP['blk'],
              PP['wq'], PP['bq'], PP['wk'], PP['bk'], PP['wv'], PP['bv'],
              PP['wo'], PP['bo'],
              PP['ln1_g'], PP['ln1_b'],
              PP['w1'], PP['b1'], PP['w2'], PP['b2'], PP['ff_g'], PP['ff_b'],
              PP['fin_g'], PP['fin_b'], PP['wcls'], PP['bcls']]

    out = pl.pallas_call(
        ext_encoder_kernel,
        out_shape=jax.ShapeDtypeStruct((T, LABEL_CLASS), jnp.float32),
        grid_spec=pltpu.PrefetchScalarGridSpec(
            num_scalar_prefetch=0, grid=(1,),
            in_specs=[_full_spec(a) for a in inputs],
            out_specs=pl.BlockSpec((T, LABEL_CLASS), lambda i: (0, 0))),
        compiler_params=pltpu.CompilerParams(dimension_semantics=("arbitrary",)),
    )(*inputs)
    return out.reshape(B, n, LABEL_CLASS)


def positional_encoding(n, d):
    position = jnp.arange(n, dtype=jnp.float32)[:, None]
    div_term = jnp.exp(jnp.arange(0, d, 2, dtype=jnp.float32) * -(math.log(10000.0) / d))
    pe = jnp.zeros((n, d), jnp.float32)
    pe = pe.at[:, 0::2].set(jnp.sin(position * div_term))
    pe = pe.at[:, 1::2].set(jnp.cos(position * div_term))
    return pe


def init_params(key):
    ks = iter(jax.random.split(key, 32))

    def w(shape, scale=0.02):
        return (scale * jax.random.normal(next(ks), shape)).astype(jnp.float32)

    L, d, dff, c = N_LAYERS, D_MODEL, D_FF, LABEL_CLASS
    return dict(
        wq=w((L, d, d)), bq=w((L, 1, d)),
        wk=w((L, d, d)), bk=w((L, 1, d)),
        wv=w((L, d, d)), bv=w((L, 1, d)),
        wo=w((L, d, d)), bo=w((L, 1, d)),
        ln1_g=1.0 + w((L, 1, d), 0.1), ln1_b=w((L, 1, d), 0.1),
        w1=w((L, d, dff)), b1=w((L, 1, dff)),
        w2=w((L, dff, d)), b2=w((L, 1, d)),
        ff_g=1.0 + w((L, 1, d), 0.1), ff_b=w((L, 1, d), 0.1),
        fin_g=1.0 + w((1, d), 0.1), fin_b=w((1, d), 0.1),
        wcls=w((d, c)), bcls=w((1, c)),
    )


def reference(top_vecs, mask_bool, P, pe):
    B, n, d = top_vecs.shape
    dh = d // HEADS
    mask_f = mask_bool.astype(jnp.float32)
    pad = ~mask_bool
    x = top_vecs * mask_f[:, :, None] + pe[None]
    for li in range(N_LAYERS):
        xn = _layer_norm(x, P['ln1_g'][li], P['ln1_b'][li]) if li != 0 else x
        q = xn @ P['wq'][li] + P['bq'][li]
        k = xn @ P['wk'][li] + P['bk'][li]
        v = xn @ P['wv'][li] + P['bv'][li]
        split = lambda t: t.reshape(B, n, HEADS, dh).transpose(0, 2, 1, 3)
        qh, kh, vh = split(q) / math.sqrt(dh), split(k), split(v)
        s = jnp.einsum('bhqd,bhkd->bhqk', qh, kh)
        s = jnp.where(pad[:, None, None, :], NEG_INF, s)
        a = jax.nn.softmax(s, axis=-1)
        ctx = jnp.einsum('bhqk,bhkd->bhqd', a, vh).transpose(0, 2, 1, 3).reshape(B, n, d)
        ctx = ctx @ P['wo'][li] + P['bo'][li]
        out = ctx + x
        fin = _layer_norm(out, P['ff_g'][li], P['ff_b'][li])
        x = (_gelu(fin @ P['w1'][li] + P['b1'][li]) @ P['w2'][li] + P['b2'][li]) + out
    x = _layer_norm(x, P['fin_g'], P['fin_b'])
    scores = x @ P['wcls'] + P['bcls']
    return scores * mask_f[:, :, None]


if __name__ == "__main__":
    key = jax.random.PRNGKey(0)
    kp, kx = jax.random.split(key)
    B, n = 2, 8
    P = init_params(kp)
    top_vecs = jax.random.normal(kx, (B, n, D_MODEL), jnp.float32)
    lengths = jnp.array([8, 5])
    mask_bool = jnp.arange(n)[None, :] < lengths[:, None]     # (B, n), True = valid
    pe = positional_encoding(n, D_MODEL)

    PP = prepare_params(P, pe, B, n)          # one-time, hoisted out of the call path
    out = jax.block_until_ready(ext_transformer_encoder(top_vecs, mask_bool, PP))
    with jax.default_matmul_precision("highest"):             # scoped, not process-global
        ref = jax.block_until_ready(reference(top_vecs, mask_bool, P, pe))
    # Kernel matmuls run at default MXU precision (bf16 operands, f32 accumulate),
    # so tolerance is 1e-2 per the perf review.
    np.testing.assert_allclose(np.asarray(out), np.asarray(ref), rtol=1e-2, atol=1e-2)
    print("KERNEL_OK")
</pallas_src>

<mosaic_0001>
module attributes {stable_mosaic.version = 11 : i64} {
  func.func @ext_encoder_kernel(%arg0: i32, %arg1: memref<16x32xf32, #tpu.memory_space<vmem>>, %arg2: memref<16x1xf32, #tpu.memory_space<vmem>>, %arg3: memref<16x32xf32, #tpu.memory_space<vmem>>, %arg4: memref<16x64xf32, #tpu.memory_space<vmem>>, %arg5: memref<4x1x32xf32, #tpu.memory_space<vmem>>, %arg6: memref<64x64xf32, #tpu.memory_space<vmem>>, %arg7: memref<2x32x32xf32, #tpu.memory_space<vmem>>, %arg8: memref<2x1x32xf32, #tpu.memory_space<vmem>>, %arg9: memref<2x32x32xf32, #tpu.memory_space<vmem>>, %arg10: memref<2x1x32xf32, #tpu.memory_space<vmem>>, %arg11: memref<2x32x32xf32, #tpu.memory_space<vmem>>, %arg12: memref<2x1x32xf32, #tpu.memory_space<vmem>>, %arg13: memref<2x32x32xf32, #tpu.memory_space<vmem>>, %arg14: memref<2x1x32xf32, #tpu.memory_space<vmem>>, %arg15: memref<2x1x32xf32, #tpu.memory_space<vmem>>, %arg16: memref<2x1x32xf32, #tpu.memory_space<vmem>>, %arg17: memref<2x32x64xf32, #tpu.memory_space<vmem>>, %arg18: memref<2x1x64xf32, #tpu.memory_space<vmem>>, %arg19: memref<2x64x32xf32, #tpu.memory_space<vmem>>, %arg20: memref<2x1x32xf32, #tpu.memory_space<vmem>>, %arg21: memref<2x1x32xf32, #tpu.memory_space<vmem>>, %arg22: memref<2x1x32xf32, #tpu.memory_space<vmem>>, %arg23: memref<1x32xf32, #tpu.memory_space<vmem>>, %arg24: memref<1x32xf32, #tpu.memory_space<vmem>>, %arg25: memref<32x3xf32, #tpu.memory_space<vmem>>, %arg26: memref<1x3xf32, #tpu.memory_space<vmem>>, %arg27: memref<16x3xf32, #tpu.memory_space<vmem>>) attributes {dimension_semantics = [#tpu.dimension_semantics<arbitrary>], iteration_bounds = array<i64: 1>, scalar_prefetch = 0 : i64, scratch_operands = 0 : i64, tpu.core_type = #tpu.core_type<tc>, window_params = [{pipeline_mode = #tpu.pipeline_mode<synchronous>, transform_indices = @transform_0, window_bounds = array<i64: 16, 32>}, {pipeline_mode = #tpu.pipeline_mode<synchronous>, transform_indices = @transform_1, window_bounds = array<i64: 16, 1>}, {pipeline_mode = #tpu.pipeline_mode<synchronous>, transform_indices = @transform_2, window_bounds = array<i64: 16, 32>}, {pipeline_mode = #tpu.pipeline_mode<synchronous>, transform_indices = @transform_3, window_bounds = array<i64: 16, 64>}, {pipeline_mode = #tpu.pipeline_mode<synchronous>, transform_indices = @transform_4, window_bounds = array<i64: 4, 1, 32>}, {pipeline_mode = #tpu.pipeline_mode<synchronous>, transform_indices = @transform_5, window_bounds = array<i64: 64, 64>}, {pipeline_mode = #tpu.pipeline_mode<synchronous>, transform_indices = @transform_6, window_bounds = array<i64: 2, 32, 32>}, {pipeline_mode = #tpu.pipeline_mode<synchronous>, transform_indices = @transform_7, window_bounds = array<i64: 2, 1, 32>}, {pipeline_mode = #tpu.pipeline_mode<synchronous>, transform_indices = @transform_8, window_bounds = array<i64: 2, 32, 32>}, {pipeline_mode = #tpu.pipeline_mode<synchronous>, transform_indices = @transform_9, window_bounds = array<i64: 2, 1, 32>}, {pipeline_mode = #tpu.pipeline_mode<synchronous>, transform_indices = @transform_10, window_bounds = array<i64: 2, 32, 32>}, {pipeline_mode = #tpu.pipeline_mode<synchronous>, transform_indices = @transform_11, window_bounds = array<i64: 2, 1, 32>}, {pipeline_mode = #tpu.pipeline_mode<synchronous>, transform_indices = @transform_12, window_bounds = array<i64: 2, 32, 32>}, {pipeline_mode = #tpu.pipeline_mode<synchronous>, transform_indices = @transform_13, window_bounds = array<i64: 2, 1, 32>}, {pipeline_mode = #tpu.pipeline_mode<synchronous>, transform_indices = @transform_14, window_bounds = array<i64: 2, 1, 32>}, {pipeline_mode = #tpu.pipeline_mode<synchronous>, transform_indices = @transform_15, window_bounds = array<i64: 2, 1, 32>}, {pipeline_mode = #tpu.pipeline_mode<synchronous>, transform_indices = @transform_16, window_bounds = array<i64: 2, 32, 64>}, {pipeline_mode = #tpu.pipeline_mode<synchronous>, transform_indices = @transform_17, window_bounds = array<i64: 2, 1, 64>}, {pipeline_mode = #tpu.pipeline_mode<synchronous>, transform_indices = @transform_18, window_bounds = array<i64: 2, 64, 32>}, {pipeline_mode = #tpu.pipeline_mode<synchronous>, transform_indices = @transform_19, window_bounds = array<i64: 2, 1, 32>}, {pipeline_mode = #tpu.pipeline_mode<synchronous>, transform_indices = @transform_20, window_bounds = array<i64: 2, 1, 32>}, {pipeline_mode = #tpu.pipeline_mode<synchronous>, transform_indices = @transform_21, window_bounds = array<i64: 2, 1, 32>}, {pipeline_mode = #tpu.pipeline_mode<synchronous>, transform_indices = @transform_22, window_bounds = array<i64: 1, 32>}, {pipeline_mode = #tpu.pipeline_mode<synchronous>, transform_indices = @transform_23, window_bounds = array<i64: 1, 32>}, {pipeline_mode = #tpu.pipeline_mode<synchronous>, transform_indices = @transform_24, window_bounds = array<i64: 32, 3>}, {pipeline_mode = #tpu.pipeline_mode<synchronous>, transform_indices = @transform_25, window_bounds = array<i64: 1, 3>}, {pipeline_mode = #tpu.pipeline_mode<synchronous>, transform_indices = @transform_26, window_bounds = array<i64: 16, 3>}]} {
    %c0 = arith.constant 0 : index
    %c0_0 = arith.constant 0 : index
    %0 = vector.load %arg2[%c0, %c0_0] : memref<16x1xf32, #tpu.memory_space<vmem>>, vector<16x1xf32>
    %c0_1 = arith.constant 0 : index
    %c0_2 = arith.constant 0 : index
    %1 = vector.load %arg4[%c0_1, %c0_2] : memref<16x64xf32, #tpu.memory_space<vmem>>, vector<16x64xf32>
    %c0_3 = arith.constant 0 : index
    %c0_4 = arith.constant 0 : index
    %c0_5 = arith.constant 0 : index
    %2 = vector.load %arg5[%c0_3, %c0_4, %c0_5] : memref<4x1x32xf32, #tpu.memory_space<vmem>>, vector<4x1x32xf32>
    %c0_6 = arith.constant 0 : index
    %c0_7 = arith.constant 0 : index
    %3 = vector.load %arg6[%c0_6, %c0_7] : memref<64x64xf32, #tpu.memory_space<vmem>>, vector<64x64xf32>
    %c0_8 = arith.constant 0 : index
    %c0_9 = arith.constant 0 : index
    %4 = vector.load %arg1[%c0_8, %c0_9] : memref<16x32xf32, #tpu.memory_space<vmem>>, vector<16x32xf32>
    %5 = vector.broadcast %0 : vector<16x1xf32> to vector<16x32xf32>
    %6 = arith.mulf %4, %5 : vector<16x32xf32>
    %c0_10 = arith.constant 0 : index
    %c0_11 = arith.constant 0 : index
    %7 = vector.load %arg3[%c0_10, %c0_11] : memref<16x32xf32, #tpu.memory_space<vmem>>, vector<16x32xf32>
    %8 = arith.addf %6, %7 : vector<16x32xf32>
    %c0_12 = arith.constant 0 : index
    %c0_13 = arith.constant 0 : index
    %c0_14 = arith.constant 0 : index
    %9 = vector.load %arg7[%c0_12, %c0_13, %c0_14] : memref<2x32x32xf32, #tpu.memory_space<vmem>>, vector<1x32x32xf32>
    %10 = vector.shape_cast %9 : vector<1x32x32xf32> to vector<32x32xf32>
    %cst = arith.constant dense<0.000000e+00> : vector<16x32xf32>
    %11 = tpu.matmul %8, %10, %cst {dimension_numbers = #tpu.dot_dimension_numbers<[1], [0], [0], [1], [0, 0, 1, 1], [], []>} : vector<16x32xf32>, vector<32x32xf32>, vector<16x32xf32> -> vector<16x32xf32>
    %c0_15 = arith.constant 0 : index
    %c0_16 = arith.constant 0 : index
    %c0_17 = arith.constant 0 : index
    %12 = vector.load %arg8[%c0_15, %c0_16, %c0_17] : memref<2x1x32xf32, #tpu.memory_space<vmem>>, vector<1x1x32xf32>
    %13 = vector.shape_cast %12 : vector<1x1x32xf32> to vector<1x32xf32>
    %14 = vector.broadcast %13 : vector<1x32xf32> to vector<16x32xf32>
    %15 = arith.addf %11, %14 : vector<16x32xf32>
    %c0_18 = arith.constant 0 : index
    %c0_19 = arith.constant 0 : index
    %c0_20 = arith.constant 0 : index
    %16 = vector.load %arg9[%c0_18, %c0_19, %c0_20] : memref<2x32x32xf32, #tpu.memory_space<vmem>>, vector<1x32x32xf32>
    %17 = vector.shape_cast %16 : vector<1x32x32xf32> to vector<32x32xf32>
    %cst_21 = arith.constant dense<0.000000e+00> : vector<16x32xf32>
    %18 = tpu.matmul %8, %17, %cst_21 {dimension_numbers = #tpu.dot_dimension_numbers<[1], [0], [0], [1], [0, 0, 1, 1], [], []>} : vector<16x32xf32>, vector<32x32xf32>, vector<16x32xf32> -> vector<16x32xf32>
    %c0_22 = arith.constant 0 : index
    %c0_23 = arith.constant 0 : index
    %c0_24 = arith.constant 0 : index
    %19 = vector.load %arg10[%c0_22, %c0_23, %c0_24] : memref<2x1x32xf32, #tpu.memory_space<vmem>>, vector<1x1x32xf32>
    %20 = vector.shape_cast %19 : vector<1x1x32xf32> to vector<1x32xf32>
    %21 = vector.broadcast %20 : vector<1x32xf32> to vector<16x32xf32>
    %22 = arith.addf %18, %21 : vector<16x32xf32>
    %c0_25 = arith.constant 0 : index
    %c0_26 = arith.constant 0 : index
    %c0_27 = arith.constant 0 : index
    %23 = vector.load %arg11[%c0_25, %c0_26, %c0_27] : memref<2x32x32xf32, #tpu.memory_space<vmem>>, vector<1x32x32xf32>
    %24 = vector.shape_cast %23 : vector<1x32x32xf32> to vector<32x32xf32>
    %cst_28 = arith.constant dense<0.000000e+00> : vector<16x32xf32>
    %25 = tpu.matmul %8, %24, %cst_28 {dimension_numbers = #tpu.dot_dimension_numbers<[1], [0], [0], [1], [0, 0, 1, 1], [], []>} : vector<16x32xf32>, vector<32x32xf32>, vector<16x32xf32> -> vector<16x32xf32>
    %c0_29 = arith.constant 0 : index
    %c0_30 = arith.constant 0 : index
    %c0_31 = arith.constant 0 : index
    %26 = vector.load %arg12[%c0_29, %c0_30, %c0_31] : memref<2x1x32xf32, #tpu.memory_space<vmem>>, vector<1x1x32xf32>
    %27 = vector.shape_cast %26 : vector<1x1x32xf32> to vector<1x32xf32>
    %28 = vector.broadcast %27 : vector<1x32xf32> to vector<16x32xf32>
    %29 = arith.addf %25, %28 : vector<16x32xf32>
    %30 = vector.shape_cast %22 : vector<16x32xf32> to vector<1x16x32xf32>
    %31 = vector.broadcast %30 : vector<1x16x32xf32> to vector<4x16x32xf32>
    %32 = vector.broadcast %2 : vector<4x1x32xf32> to vector<4x16x32xf32>
    %33 = arith.mulf %31, %32 : vector<4x16x32xf32>
    %34 = vector.shape_cast %33 : vector<4x16x32xf32> to vector<64x32xf32>
    %35 = vector.shape_cast %29 : vector<16x32xf32> to vector<1x16x32xf32>
    %36 = vector.broadcast %35 : vector<1x16x32xf32> to vector<4x16x32xf32>
    %37 = vector.broadcast %2 : vector<4x1x32xf32> to vector<4x16x32xf32>
    %38 = arith.mulf %36, %37 : vector<4x16x32xf32>
    %39 = vector.shape_cast %38 : vector<4x16x32xf32> to vector<64x32xf32>
    "tpu.trace_start"() <{level = 10 : i32, message = "id,zd->iz"}> : () -> ()
    %cst_32 = arith.constant dense<0.000000e+00> : vector<16x64xf32>
    %40 = tpu.matmul %15, %34, %cst_32 {dimension_numbers = #tpu.dot_dimension_numbers<[1], [1], [0], [0], [0, 0, 1, 0], [], []>} : vector<16x32xf32>, vector<64x32xf32>, vector<16x64xf32> -> vector<16x64xf32>
    "tpu.trace_stop"() : () -> ()
    %41 = arith.addf %40, %1 : vector<16x64xf32>
    %cst_33 = arith.constant dense<0xFF800000> : vector<16xf32>
    %42 = vector.multi_reduction <maximumf>, %41, %cst_33 [1] : vector<16x64xf32> to vector<16xf32>
    %43 = vector.shape_cast %42 : vector<16xf32> to vector<16x1xf32>
    %44 = vector.broadcast %43 : vector<16x1xf32> to vector<16x64xf32>
    %45 = arith.subf %41, %44 : vector<16x64xf32>
    %46 = math.exp %45 : vector<16x64xf32>
    %cst_34 = arith.constant dense<0.000000e+00> : vector<16x64xf32>
    %47 = tpu.matmul %46, %3, %cst_34 {dimension_numbers = #tpu.dot_dimension_numbers<[1], [0], [0], [1], [0, 0, 1, 1], [], []>} : vector<16x64xf32>, vector<64x64xf32>, vector<16x64xf32> -> vector<16x64xf32>
    %cst_35 = arith.constant 9.99999968E-21 : f32
    %48 = vector.broadcast %cst_35 : f32 to vector<16x64xf32>
    %49 = arith.maximumf %47, %48 : vector<16x64xf32>
    %50 = tpu.reciprocal %49 {approx = true} : vector<16x64xf32> -> vector<16x64xf32>
    %51 = arith.mulf %46, %50 : vector<16x64xf32>
    %cst_36 = arith.constant dense<0.000000e+00> : vector<16x32xf32>
    %52 = tpu.matmul %51, %39, %cst_36 {dimension_numbers = #tpu.dot_dimension_numbers<[1], [0], [0], [1], [0, 0, 1, 1], [], []>} : vector<16x64xf32>, vector<64x32xf32>, vector<16x32xf32> -> vector<16x32xf32>
    %c0_37 = arith.constant 0 : index
    %c0_38 = arith.constant 0 : index
    %c0_39 = arith.constant 0 : index
    %53 = vector.load %arg13[%c0_37, %c0_38, %c0_39] : memref<2x32x32xf32, #tpu.memory_space<vmem>>, vector<1x32x32xf32>
    %54 = vector.shape_cast %53 : vector<1x32x32xf32> to vector<32x32xf32>
    %cst_40 = arith.constant dense<0.000000e+00> : vector<16x32xf32>
    %55 = tpu.matmul %52, %54, %cst_40 {dimension_numbers = #tpu.dot_dimension_numbers<[1], [0], [0], [1], [0, 0, 1, 1], [], []>} : vector<16x32xf32>, vector<32x32xf32>, vector<16x32xf32> -> vector<16x32xf32>
    %c0_41 = arith.constant 0 : index
    %c0_42 = arith.constant 0 : index
    %c0_43 = arith.constant 0 : index
    %56 = vector.load %arg14[%c0_41, %c0_42, %c0_43] : memref<2x1x32xf32, #tpu.memory_space<vmem>>, vector<1x1x32xf32>
    %57 = vector.shape_cast %56 : vector<1x1x32xf32> to vector<1x32xf32>
    %58 = vector.broadcast %57 : vector<1x32xf32> to vector<16x32xf32>
    %59 = arith.addf %55, %58 : vector<16x32xf32>
    %60 = arith.addf %59, %8 : vector<16x32xf32>
    %c0_44 = arith.constant 0 : index
    %c0_45 = arith.constant 0 : index
    %c0_46 = arith.constant 0 : index
    %61 = vector.load %arg21[%c0_44, %c0_45, %c0_46] : memref<2x1x32xf32, #tpu.memory_space<vmem>>, vector<1x1x32xf32>
    %62 = vector.shape_cast %61 : vector<1x1x32xf32> to vector<1x32xf32>
    %c0_47 = arith.constant 0 : index
    %c0_48 = arith.constant 0 : index
    %c0_49 = arith.constant 0 : index
    %63 = vector.load %arg22[%c0_47, %c0_48, %c0_49] : memref<2x1x32xf32, #tpu.memory_space<vmem>>, vector<1x1x32xf32>
    %64 = vector.shape_cast %63 : vector<1x1x32xf32> to vector<1x32xf32>
    %cst_50 = arith.constant dense<0.000000e+00> : vector<16xf32>
    %65 = vector.multi_reduction <add>, %60, %cst_50 [1] : vector<16x32xf32> to vector<16xf32>
    %66 = vector.shape_cast %65 : vector<16xf32> to vector<16x1xf32>
    %cst_51 = arith.constant 3.200000e+01 : f32
    %67 = vector.broadcast %cst_51 : f32 to vector<16x1xf32>
    %68 = arith.divf %66, %67 : vector<16x1xf32>
    %69 = vector.broadcast %68 : vector<16x1xf32> to vector<16x32xf32>
    %70 = arith.subf %60, %69 : vector<16x32xf32>
    %71 = arith.mulf %70, %70 : vector<16x32xf32>
    %cst_52 = arith.constant dense<0.000000e+00> : vector<16xf32>
    %72 = vector.multi_reduction <add>, %71, %cst_52 [1] : vector<16x32xf32> to vector<16xf32>
    %73 = vector.shape_cast %72 : vector<16xf32> to vector<16x1xf32>
    %cst_53 = arith.constant 3.200000e+01 : f32
    %74 = vector.broadcast %cst_53 : f32 to vector<16x1xf32>
    %75 = arith.divf %73, %74 : vector<16x1xf32>
    %76 = vector.broadcast %68 : vector<16x1xf32> to vector<16x32xf32>
    %77 = arith.subf %60, %76 : vector<16x32xf32>
    %cst_54 = arith.constant 9.99999997E-7 : f32
    %78 = vector.broadcast %cst_54 : f32 to vector<16x1xf32>
    %79 = arith.addf %75, %78 : vector<16x1xf32>
    %80 = math.rsqrt %79 : vector<16x1xf32>
    %81 = vector.broadcast %80 : vector<16x1xf32> to vector<16x32xf32>
    %82 = arith.mulf %77, %81 : vector<16x32xf32>
    %83 = vector.broadcast %62 : vector<1x32xf32> to vector<16x32xf32>
    %84 = arith.mulf %82, %83 : vector<16x32xf32>
    %85 = vector.broadcast %64 : vector<1x32xf32> to vector<16x32xf32>
    %86 = arith.addf %84, %85 : vector<16x32xf32>
    %c0_55 = arith.constant 0 : index
    %c0_56 = arith.constant 0 : index
    %c0_57 = arith.constant 0 : index
    %87 = vector.load %arg17[%c0_55, %c0_56, %c0_57] : memref<2x32x64xf32, #tpu.memory_space<vmem>>, vector<1x32x64xf32>
    %88 = vector.shape_cast %87 : vector<1x32x64xf32> to vector<32x64xf32>
    %cst_58 = arith.constant dense<0.000000e+00> : vector<16x64xf32>
    %89 = tpu.matmul %86, %88, %cst_58 {dimension_numbers = #tpu.dot_dimension_numbers<[1], [0], [0], [1], [0, 0, 1, 1], [], []>} : vector<16x32xf32>, vector<32x64xf32>, vector<16x64xf32> -> vector<16x64xf32>
    %c0_59 = arith.constant 0 : index
    %c0_60 = arith.constant 0 : index
    %c0_61 = arith.constant 0 : index
    %90 = vector.load %arg18[%c0_59, %c0_60, %c0_61] : memref<2x1x64xf32, #tpu.memory_space<vmem>>, vector<1x1x64xf32>
    %91 = vector.shape_cast %90 : vector<1x1x64xf32> to vector<1x64xf32>
    %92 = vector.broadcast %91 : vector<1x64xf32> to vector<16x64xf32>
    %93 = arith.addf %89, %92 : vector<16x64xf32>
    %cst_62 = arith.constant 5.000000e-01 : f32
    %94 = vector.broadcast %cst_62 : f32 to vector<16x64xf32>
    %95 = arith.mulf %94, %93 : vector<16x64xf32>
    %cst_63 = arith.constant 4.471500e-02 : f32
    %96 = vector.broadcast %cst_63 : f32 to vector<16x64xf32>
    %97 = arith.mulf %96, %93 : vector<16x64xf32>
    %98 = arith.mulf %97, %93 : vector<16x64xf32>
    %99 = arith.mulf %98, %93 : vector<16x64xf32>
    %100 = arith.addf %93, %99 : vector<16x64xf32>
    %cst_64 = arith.constant 0.797884583 : f32
    %101 = vector.broadcast %cst_64 : f32 to vector<16x64xf32>
    %102 = arith.mulf %101, %100 : vector<16x64xf32>
    %103 = math.tanh %102 : vector<16x64xf32>
    %cst_65 = arith.constant 1.000000e+00 : f32
    %104 = vector.broadcast %cst_65 : f32 to vector<16x64xf32>
    %105 = arith.addf %104, %103 : vector<16x64xf32>
    %106 = arith.mulf %95, %105 : vector<16x64xf32>
    %c0_66 = arith.constant 0 : index
    %c0_67 = arith.constant 0 : index
    %c0_68 = arith.constant 0 : index
    %107 = vector.load %arg19[%c0_66, %c0_67, %c0_68] : memref<2x64x32xf32, #tpu.memory_space<vmem>>, vector<1x64x32xf32>
    %108 = vector.shape_cast %107 : vector<1x64x32xf32> to vector<64x32xf32>
    %cst_69 = arith.constant dense<0.000000e+00> : vector<16x32xf32>
    %109 = tpu.matmul %106, %108, %cst_69 {dimension_numbers = #tpu.dot_dimension_numbers<[1], [0], [0], [1], [0, 0, 1, 1], [], []>} : vector<16x64xf32>, vector<64x32xf32>, vector<16x32xf32> -> vector<16x32xf32>
    %c0_70 = arith.constant 0 : index
    %c0_71 = arith.constant 0 : index
    %c0_72 = arith.constant 0 : index
    %110 = vector.load %arg20[%c0_70, %c0_71, %c0_72] : memref<2x1x32xf32, #tpu.memory_space<vmem>>, vector<1x1x32xf32>
    %111 = vector.shape_cast %110 : vector<1x1x32xf32> to vector<1x32xf32>
    %112 = vector.broadcast %111 : vector<1x32xf32> to vector<16x32xf32>
    %113 = arith.addf %109, %112 : vector<16x32xf32>
    %114 = arith.addf %113, %60 : vector<16x32xf32>
    %c1 = arith.constant 1 : index
    %c0_73 = arith.constant 0 : index
    %c0_74 = arith.constant 0 : index
    %115 = vector.load %arg15[%c1, %c0_73, %c0_74] : memref<2x1x32xf32, #tpu.memory_space<vmem>>, vector<1x1x32xf32>
    %116 = vector.shape_cast %115 : vector<1x1x32xf32> to vector<1x32xf32>
    %c1_75 = arith.constant 1 : index
    %c0_76 = arith.constant 0 : index
    %c0_77 = arith.constant 0 : index
    %117 = vector.load %arg16[%c1_75, %c0_76, %c0_77] : memref<2x1x32xf32, #tpu.memory_space<vmem>>, vector<1x1x32xf32>
    %118 = vector.shape_cast %117 : vector<1x1x32xf32> to vector<1x32xf32>
    %cst_78 = arith.constant dense<0.000000e+00> : vector<16xf32>
    %119 = vector.multi_reduction <add>, %114, %cst_78 [1] : vector<16x32xf32> to vector<16xf32>
    %120 = vector.shape_cast %119 : vector<16xf32> to vector<16x1xf32>
    %cst_79 = arith.constant 3.200000e+01 : f32
    %121 = vector.broadcast %cst_79 : f32 to vector<16x1xf32>
    %122 = arith.divf %120, %121 : vector<16x1xf32>
    %123 = vector.broadcast %122 : vector<16x1xf32> to vector<16x32xf32>
    %124 = arith.subf %114, %123 : vector<16x32xf32>
    %125 = arith.mulf %124, %124 : vector<16x32xf32>
    %cst_80 = arith.constant dense<0.000000e+00> : vector<16xf32>
    %126 = vector.multi_reduction <add>, %125, %cst_80 [1] : vector<16x32xf32> to vector<16xf32>
    %127 = vector.shape_cast %126 : vector<16xf32> to vector<16x1xf32>
    %cst_81 = arith.constant 3.200000e+01 : f32
    %128 = vector.broadcast %cst_81 : f32 to vector<16x1xf32>
    %129 = arith.divf %127, %128 : vector<16x1xf32>
    %130 = vector.broadcast %122 : vector<16x1xf32> to vector<16x32xf32>
    %131 = arith.subf %114, %130 : vector<16x32xf32>
    %cst_82 = arith.constant 9.99999997E-7 : f32
    %132 = vector.broadcast %cst_82 : f32 to vector<16x1xf32>
    %133 = arith.addf %129, %132 : vector<16x1xf32>
    %134 = math.rsqrt %133 : vector<16x1xf32>
    %135 = vector.broadcast %134 : vector<16x1xf32> to vector<16x32xf32>
    %136 = arith.mulf %131, %135 : vector<16x32xf32>
    %137 = vector.broadcast %116 : vector<1x32xf32> to vector<16x32xf32>
    %138 = arith.mulf %136, %137 : vector<16x32xf32>
    %139 = vector.broadcast %118 : vector<1x32xf32> to vector<16x32xf32>
    %140 = arith.addf %138, %139 : vector<16x32xf32>
    %c1_83 = arith.constant 1 : index
    %c0_84 = arith.constant 0 : index
    %c0_85 = arith.constant 0 : index
    %141 = vector.load %arg7[%c1_83, %c0_84, %c0_85] : memref<2x32x32xf32, #tpu.memory_space<vmem>>, vector<1x32x32xf32>
    %142 = vector.shape_cast %141 : vector<1x32x32xf32> to vector<32x32xf32>
    %cst_86 = arith.constant dense<0.000000e+00> : vector<16x32xf32>
    %143 = tpu.matmul %140, %142, %cst_86 {dimension_numbers = #tpu.dot_dimension_numbers<[1], [0], [0], [1], [0, 0, 1, 1], [], []>} : vector<16x32xf32>, vector<32x32xf32>, vector<16x32xf32> -> vector<16x32xf32>
    %c1_87 = arith.constant 1 : index
    %c0_88 = arith.constant 0 : index
    %c0_89 = arith.constant 0 : index
    %144 = vector.load %arg8[%c1_87, %c0_88, %c0_89] : memref<2x1x32xf32, #tpu.memory_space<vmem>>, vector<1x1x32xf32>
    %145 = vector.shape_cast %144 : vector<1x1x32xf32> to vector<1x32xf32>
    %146 = vector.broadcast %145 : vector<1x32xf32> to vector<16x32xf32>
    %147 = arith.addf %143, %146 : vector<16x32xf32>
    %c1_90 = arith.constant 1 : index
    %c0_91 = arith.constant 0 : index
    %c0_92 = arith.constant 0 : index
    %148 = vector.load %arg9[%c1_90, %c0_91, %c0_92] : memref<2x32x32xf32, #tpu.memory_space<vmem>>, vector<1x32x32xf32>
    %149 = vector.shape_cast %148 : vector<1x32x32xf32> to vector<32x32xf32>
    %cst_93 = arith.constant dense<0.000000e+00> : vector<16x32xf32>
    %150 = tpu.matmul %140, %149, %cst_93 {dimension_numbers = #tpu.dot_dimension_numbers<[1], [0], [0], [1], [0, 0, 1, 1], [], []>} : vector<16x32xf32>, vector<32x32xf32>, vector<16x32xf32> -> vector<16x32xf32>
    %c1_94 = arith.constant 1 : index
    %c0_95 = arith.constant 0 : index
    %c0_96 = arith.constant 0 : index
    %151 = vector.load %arg10[%c1_94, %c0_95, %c0_96] : memref<2x1x32xf32, #tpu.memory_space<vmem>>, vector<1x1x32xf32>
    %152 = vector.shape_cast %151 : vector<1x1x32xf32> to vector<1x32xf32>
    %153 = vector.broadcast %152 : vector<1x32xf32> to vector<16x32xf32>
    %154 = arith.addf %150, %153 : vector<16x32xf32>
    %c1_97 = arith.constant 1 : index
    %c0_98 = arith.constant 0 : index
    %c0_99 = arith.constant 0 : index
    %155 = vector.load %arg11[%c1_97, %c0_98, %c0_99] : memref<2x32x32xf32, #tpu.memory_space<vmem>>, vector<1x32x32xf32>
    %156 = vector.shape_cast %155 : vector<1x32x32xf32> to vector<32x32xf32>
    %cst_100 = arith.constant dense<0.000000e+00> : vector<16x32xf32>
    %157 = tpu.matmul %140, %156, %cst_100 {dimension_numbers = #tpu.dot_dimension_numbers<[1], [0], [0], [1], [0, 0, 1, 1], [], []>} : vector<16x32xf32>, vector<32x32xf32>, vector<16x32xf32> -> vector<16x32xf32>
    %c1_101 = arith.constant 1 : index
    %c0_102 = arith.constant 0 : index
    %c0_103 = arith.constant 0 : index
    %158 = vector.load %arg12[%c1_101, %c0_102, %c0_103] : memref<2x1x32xf32, #tpu.memory_space<vmem>>, vector<1x1x32xf32>
    %159 = vector.shape_cast %158 : vector<1x1x32xf32> to vector<1x32xf32>
    %160 = vector.broadcast %159 : vector<1x32xf32> to vector<16x32xf32>
    %161 = arith.addf %157, %160 : vector<16x32xf32>
    %162 = vector.shape_cast %154 : vector<16x32xf32> to vector<1x16x32xf32>
    %163 = vector.broadcast %162 : vector<1x16x32xf32> to vector<4x16x32xf32>
    %164 = vector.broadcast %2 : vector<4x1x32xf32> to vector<4x16x32xf32>
    %165 = arith.mulf %163, %164 : vector<4x16x32xf32>
    %166 = vector.shape_cast %165 : vector<4x16x32xf32> to vector<64x32xf32>
    %167 = vector.shape_cast %161 : vector<16x32xf32> to vector<1x16x32xf32>
    %168 = vector.broadcast %167 : vector<1x16x32xf32> to vector<4x16x32xf32>
    %169 = vector.broadcast %2 : vector<4x1x32xf32> to vector<4x16x32xf32>
    %170 = arith.mulf %168, %169 : vector<4x16x32xf32>
    %171 = vector.shape_cast %170 : vector<4x16x32xf32> to vector<64x32xf32>
    "tpu.trace_start"() <{level = 10 : i32, message = "id,zd->iz"}> : () -> ()
    %cst_104 = arith.constant dense<0.000000e+00> : vector<16x64xf32>
    %172 = tpu.matmul %147, %166, %cst_104 {dimension_numbers = #tpu.dot_dimension_numbers<[1], [1], [0], [0], [0, 0, 1, 0], [], []>} : vector<16x32xf32>, vector<64x32xf32>, vector<16x64xf32> -> vector<16x64xf32>
    "tpu.trace_stop"() : () -> ()
    %173 = arith.addf %172, %1 : vector<16x64xf32>
    %cst_105 = arith.constant dense<0xFF800000> : vector<16xf32>
    %174 = vector.multi_reduction <maximumf>, %173, %cst_105 [1] : vector<16x64xf32> to vector<16xf32>
    %175 = vector.shape_cast %174 : vector<16xf32> to vector<16x1xf32>
    %176 = vector.broadcast %175 : vector<16x1xf32> to vector<16x64xf32>
    %177 = arith.subf %173, %176 : vector<16x64xf32>
    %178 = math.exp %177 : vector<16x64xf32>
    %cst_106 = arith.constant dense<0.000000e+00> : vector<16x64xf32>
    %179 = tpu.matmul %178, %3, %cst_106 {dimension_numbers = #tpu.dot_dimension_numbers<[1], [0], [0], [1], [0, 0, 1, 1], [], []>} : vector<16x64xf32>, vector<64x64xf32>, vector<16x64xf32> -> vector<16x64xf32>
    %cst_107 = arith.constant 9.99999968E-21 : f32
    %180 = vector.broadcast %cst_107 : f32 to vector<16x64xf32>
    %181 = arith.maximumf %179, %180 : vector<16x64xf32>
    %182 = tpu.reciprocal %181 {approx = true} : vector<16x64xf32> -> vector<16x64xf32>
    %183 = arith.mulf %178, %182 : vector<16x64xf32>
    %cst_108 = arith.constant dense<0.000000e+00> : vector<16x32xf32>
    %184 = tpu.matmul %183, %171, %cst_108 {dimension_numbers = #tpu.dot_dimension_numbers<[1], [0], [0], [1], [0, 0, 1, 1], [], []>} : vector<16x64xf32>, vector<64x32xf32>, vector<16x32xf32> -> vector<16x32xf32>
    %c1_109 = arith.constant 1 : index
    %c0_110 = arith.constant 0 : index
    %c0_111 = arith.constant 0 : index
    %185 = vector.load %arg13[%c1_109, %c0_110, %c0_111] : memref<2x32x32xf32, #tpu.memory_space<vmem>>, vector<1x32x32xf32>
    %186 = vector.shape_cast %185 : vector<1x32x32xf32> to vector<32x32xf32>
    %cst_112 = arith.constant dense<0.000000e+00> : vector<16x32xf32>
    %187 = tpu.matmul %184, %186, %cst_112 {dimension_numbers = #tpu.dot_dimension_numbers<[1], [0], [0], [1], [0, 0, 1, 1], [], []>} : vector<16x32xf32>, vector<32x32xf32>, vector<16x32xf32> -> vector<16x32xf32>
    %c1_113 = arith.constant 1 : index
    %c0_114 = arith.constant 0 : index
    %c0_115 = arith.constant 0 : index
    %188 = vector.load %arg14[%c1_113, %c0_114, %c0_115] : memref<2x1x32xf32, #tpu.memory_space<vmem>>, vector<1x1x32xf32>
    %189 = vector.shape_cast %188 : vector<1x1x32xf32> to vector<1x32xf32>
    %190 = vector.broadcast %189 : vector<1x32xf32> to vector<16x32xf32>
    %191 = arith.addf %187, %190 : vector<16x32xf32>
    %192 = arith.addf %191, %114 : vector<16x32xf32>
    %c1_116 = arith.constant 1 : index
    %c0_117 = arith.constant 0 : index
    %c0_118 = arith.constant 0 : index
    %193 = vector.load %arg21[%c1_116, %c0_117, %c0_118] : memref<2x1x32xf32, #tpu.memory_space<vmem>>, vector<1x1x32xf32>
    %194 = vector.shape_cast %193 : vector<1x1x32xf32> to vector<1x32xf32>
    %c1_119 = arith.constant 1 : index
    %c0_120 = arith.constant 0 : index
    %c0_121 = arith.constant 0 : index
    %195 = vector.load %arg22[%c1_119, %c0_120, %c0_121] : memref<2x1x32xf32, #tpu.memory_space<vmem>>, vector<1x1x32xf32>
    %196 = vector.shape_cast %195 : vector<1x1x32xf32> to vector<1x32xf32>
    %cst_122 = arith.constant dense<0.000000e+00> : vector<16xf32>
    %197 = vector.multi_reduction <add>, %192, %cst_122 [1] : vector<16x32xf32> to vector<16xf32>
    %198 = vector.shape_cast %197 : vector<16xf32> to vector<16x1xf32>
    %cst_123 = arith.constant 3.200000e+01 : f32
    %199 = vector.broadcast %cst_123 : f32 to vector<16x1xf32>
    %200 = arith.divf %198, %199 : vector<16x1xf32>
    %201 = vector.broadcast %200 : vector<16x1xf32> to vector<16x32xf32>
    %202 = arith.subf %192, %201 : vector<16x32xf32>
    %203 = arith.mulf %202, %202 : vector<16x32xf32>
    %cst_124 = arith.constant dense<0.000000e+00> : vector<16xf32>
    %204 = vector.multi_reduction <add>, %203, %cst_124 [1] : vector<16x32xf32> to vector<16xf32>
    %205 = vector.shape_cast %204 : vector<16xf32> to vector<16x1xf32>
    %cst_125 = arith.constant 3.200000e+01 : f32
    %206 = vector.broadcast %cst_125 : f32 to vector<16x1xf32>
    %207 = arith.divf %205, %206 : vector<16x1xf32>
    %208 = vector.broadcast %200 : vector<16x1xf32> to vector<16x32xf32>
    %209 = arith.subf %192, %208 : vector<16x32xf32>
    %cst_126 = arith.constant 9.99999997E-7 : f32
    %210 = vector.broadcast %cst_126 : f32 to vector<16x1xf32>
    %211 = arith.addf %207, %210 : vector<16x1xf32>
    %212 = math.rsqrt %211 : vector<16x1xf32>
    %213 = vector.broadcast %212 : vector<16x1xf32> to vector<16x32xf32>
    %214 = arith.mulf %209, %213 : vector<16x32xf32>
    %215 = vector.broadcast %194 : vector<1x32xf32> to vector<16x32xf32>
    %216 = arith.mulf %214, %215 : vector<16x32xf32>
    %217 = vector.broadcast %196 : vector<1x32xf32> to vector<16x32xf32>
    %218 = arith.addf %216, %217 : vector<16x32xf32>
    %c1_127 = arith.constant 1 : index
    %c0_128 = arith.constant 0 : index
    %c0_129 = arith.constant 0 : index
    %219 = vector.load %arg17[%c1_127, %c0_128, %c0_129] : memref<2x32x64xf32, #tpu.memory_space<vmem>>, vector<1x32x64xf32>
    %220 = vector.shape_cast %219 : vector<1x32x64xf32> to vector<32x64xf32>
    %cst_130 = arith.constant dense<0.000000e+00> : vector<16x64xf32>
    %221 = tpu.matmul %218, %220, %cst_130 {dimension_numbers = #tpu.dot_dimension_numbers<[1], [0], [0], [1], [0, 0, 1, 1], [], []>} : vector<16x32xf32>, vector<32x64xf32>, vector<16x64xf32> -> vector<16x64xf32>
    %c1_131 = arith.constant 1 : index
    %c0_132 = arith.constant 0 : index
    %c0_133 = arith.constant 0 : index
    %222 = vector.load %arg18[%c1_131, %c0_132, %c0_133] : memref<2x1x64xf32, #tpu.memory_space<vmem>>, vector<1x1x64xf32>
    %223 = vector.shape_cast %222 : vector<1x1x64xf32> to vector<1x64xf32>
    %224 = vector.broadcast %223 : vector<1x64xf32> to vector<16x64xf32>
    %225 = arith.addf %221, %224 : vector<16x64xf32>
    %cst_134 = arith.constant 5.000000e-01 : f32
    %226 = vector.broadcast %cst_134 : f32 to vector<16x64xf32>
    %227 = arith.mulf %226, %225 : vector<16x64xf32>
    %cst_135 = arith.constant 4.471500e-02 : f32
    %228 = vector.broadcast %cst_135 : f32 to vector<16x64xf32>
    %229 = arith.mulf %228, %225 : vector<16x64xf32>
    %230 = arith.mulf %229, %225 : vector<16x64xf32>
    %231 = arith.mulf %230, %225 : vector<16x64xf32>
    %232 = arith.addf %225, %231 : vector<16x64xf32>
    %cst_136 = arith.constant 0.797884583 : f32
    %233 = vector.broadcast %cst_136 : f32 to vector<16x64xf32>
    %234 = arith.mulf %233, %232 : vector<16x64xf32>
    %235 = math.tanh %234 : vector<16x64xf32>
    %cst_137 = arith.constant 1.000000e+00 : f32
    %236 = vector.broadcast %cst_137 : f32 to vector<16x64xf32>
    %237 = arith.addf %236, %235 : vector<16x64xf32>
    %238 = arith.mulf %227, %237 : vector<16x64xf32>
    %c1_138 = arith.constant 1 : index
    %c0_139 = arith.constant 0 : index
    %c0_140 = arith.constant 0 : index
    %239 = vector.load %arg19[%c1_138, %c0_139, %c0_140] : memref<2x64x32xf32, #tpu.memory_space<vmem>>, vector<1x64x32xf32>
    %240 = vector.shape_cast %239 : vector<1x64x32xf32> to vector<64x32xf32>
    %cst_141 = arith.constant dense<0.000000e+00> : vector<16x32xf32>
    %241 = tpu.matmul %238, %240, %cst_141 {dimension_numbers = #tpu.dot_dimension_numbers<[1], [0], [0], [1], [0, 0, 1, 1], [], []>} : vector<16x64xf32>, vector<64x32xf32>, vector<16x32xf32> -> vector<16x32xf32>
    %c1_142 = arith.constant 1 : index
    %c0_143 = arith.constant 0 : index
    %c0_144 = arith.constant 0 : index
    %242 = vector.load %arg20[%c1_142, %c0_143, %c0_144] : memref<2x1x32xf32, #tpu.memory_space<vmem>>, vector<1x1x32xf32>
    %243 = vector.shape_cast %242 : vector<1x1x32xf32> to vector<1x32xf32>
    %244 = vector.broadcast %243 : vector<1x32xf32> to vector<16x32xf32>
    %245 = arith.addf %241, %244 : vector<16x32xf32>
    %246 = arith.addf %245, %192 : vector<16x32xf32>
    %c0_145 = arith.constant 0 : index
    %c0_146 = arith.constant 0 : index
    %247 = vector.load %arg23[%c0_145, %c0_146] : memref<1x32xf32, #tpu.memory_space<vmem>>, vector<1x32xf32>
    %c0_147 = arith.constant 0 : index
    %c0_148 = arith.constant 0 : index
    %248 = vector.load %arg24[%c0_147, %c0_148] : memref<1x32xf32, #tpu.memory_space<vmem>>, vector<1x32xf32>
    %cst_149 = arith.constant dense<0.000000e+00> : vector<16xf32>
    %249 = vector.multi_reduction <add>, %246, %cst_149 [1] : vector<16x32xf32> to vector<16xf32>
    %250 = vector.shape_cast %249 : vector<16xf32> to vector<16x1xf32>
    %cst_150 = arith.constant 3.200000e+01 : f32
    %251 = vector.broadcast %cst_150 : f32 to vector<16x1xf32>
    %252 = arith.divf %250, %251 : vector<16x1xf32>
    %253 = vector.broadcast %252 : vector<16x1xf32> to vector<16x32xf32>
    %254 = arith.subf %246, %253 : vector<16x32xf32>
    %255 = arith.mulf %254, %254 : vector<16x32xf32>
    %cst_151 = arith.constant dense<0.000000e+00> : vector<16xf32>
    %256 = vector.multi_reduction <add>, %255, %cst_151 [1] : vector<16x32xf32> to vector<16xf32>
    %257 = vector.shape_cast %256 : vector<16xf32> to vector<16x1xf32>
    %cst_152 = arith.constant 3.200000e+01 : f32
    %258 = vector.broadcast %cst_152 : f32 to vector<16x1xf32>
    %259 = arith.divf %257, %258 : vector<16x1xf32>
    %260 = vector.broadcast %252 : vector<16x1xf32> to vector<16x32xf32>
    %261 = arith.subf %246, %260 : vector<16x32xf32>
    %cst_153 = arith.constant 9.99999997E-7 : f32
    %262 = vector.broadcast %cst_153 : f32 to vector<16x1xf32>
    %263 = arith.addf %259, %262 : vector<16x1xf32>
    %264 = math.rsqrt %263 : vector<16x1xf32>
    %265 = vector.broadcast %264 : vector<16x1xf32> to vector<16x32xf32>
    %266 = arith.mulf %261, %265 : vector<16x32xf32>
    %267 = vector.broadcast %247 : vector<1x32xf32> to vector<16x32xf32>
    %268 = arith.mulf %266, %267 : vector<16x32xf32>
    %269 = vector.broadcast %248 : vector<1x32xf32> to vector<16x32xf32>
    %270 = arith.addf %268, %269 : vector<16x32xf32>
    %c0_154 = arith.constant 0 : index
    %c0_155 = arith.constant 0 : index
    %271 = vector.load %arg25[%c0_154, %c0_155] : memref<32x3xf32, #tpu.memory_space<vmem>>, vector<32x3xf32>
    %cst_156 = arith.constant dense<0.000000e+00> : vector<16x3xf32>
    %272 = tpu.matmul %270, %271, %cst_156 {dimension_numbers = #tpu.dot_dimension_numbers<[1], [0], [0], [1], [0, 0, 1, 1], [], []>} : vector<16x32xf32>, vector<32x3xf32>, vector<16x3xf32> -> vector<16x3xf32>
    %c0_157 = arith.constant 0 : index
    %c0_158 = arith.constant 0 : index
    %273 = vector.load %arg26[%c0_157, %c0_158] : memref<1x3xf32, #tpu.memory_space<vmem>>, vector<1x3xf32>
    %274 = vector.broadcast %273 : vector<1x3xf32> to vector<16x3xf32>
    %275 = arith.addf %272, %274 : vector<16x3xf32>
    %276 = vector.broadcast %0 : vector<16x1xf32> to vector<16x3xf32>
    %277 = arith.mulf %275, %276 : vector<16x3xf32>
    %c0_159 = arith.constant 0 : index
    %c0_160 = arith.constant 0 : index
    %278 = vector.load %arg27[%c0_159, %c0_160] : memref<16x3xf32, #tpu.memory_space<vmem>>, vector<16x3xf32>
    tpu.vector_store %arg27[%c0_159, %c0_160], %277 {strides = array<i32>} : memref<16x3xf32, #tpu.memory_space<vmem>>, vector<16x3xf32>,
    return
  }
  func.func @transform_0(%arg0: i32) -> (i32, i32) {
    %c0_i32 = arith.constant 0 : i32
    %c0_i32_0 = arith.constant 0 : i32
    %c0_i32_1 = arith.constant 0 : i32
    return %c0_i32, %c0_i32_0 : i32, i32
  }
  func.func @transform_1(%arg0: i32) -> (i32, i32) {
    %c0_i32 = arith.constant 0 : i32
    %c0_i32_0 = arith.constant 0 : i32
    %c0_i32_1 = arith.constant 0 : i32
    return %c0_i32, %c0_i32_0 : i32, i32
  }
  func.func @transform_2(%arg0: i32) -> (i32, i32) {
    %c0_i32 = arith.constant 0 : i32
    %c0_i32_0 = arith.constant 0 : i32
    %c0_i32_1 = arith.constant 0 : i32
    return %c0_i32, %c0_i32_0 : i32, i32
  }
  func.func @transform_3(%arg0: i32) -> (i32, i32) {
    %c0_i32 = arith.constant 0 : i32
    %c0_i32_0 = arith.constant 0 : i32
    %c0_i32_1 = arith.constant 0 : i32
    return %c0_i32, %c0_i32_0 : i32, i32
  }
  func.func @transform_4(%arg0: i32) -> (i32, i32, i32) {
    %c0_i32 = arith.constant 0 : i32
    %c0_i32_0 = arith.constant 0 : i32
    %c0_i32_1 = arith.constant 0 : i32
    %c0_i32_2 = arith.constant 0 : i32
    return %c0_i32, %c0_i32_0, %c0_i32_1 : i32, i32, i32
  }
  func.func @transform_5(%arg0: i32) -> (i32, i32) {
    %c0_i32 = arith.constant 0 : i32
    %c0_i32_0 = arith.constant 0 : i32
    %c0_i32_1 = arith.constant 0 : i32
    return %c0_i32, %c0_i32_0 : i32, i32
  }
  func.func @transform_6(%arg0: i32) -> (i32, i32, i32) {
    %c0_i32 = arith.constant 0 : i32
    %c0_i32_0 = arith.constant 0 : i32
    %c0_i32_1 = arith.constant 0 : i32
    %c0_i32_2 = arith.constant 0 : i32
    return %c0_i32, %c0_i32_0, %c0_i32_1 : i32, i32, i32
  }
  func.func @transform_7(%arg0: i32) -> (i32, i32, i32) {
    %c0_i32 = arith.constant 0 : i32
    %c0_i32_0 = arith.constant 0 : i32
    %c0_i32_1 = arith.constant 0 : i32
    %c0_i32_2 = arith.constant 0 : i32
    return %c0_i32, %c0_i32_0, %c0_i32_1 : i32, i32, i32
  }
  func.func @transform_8(%arg0: i32) -> (i32, i32, i32) {
    %c0_i32 = arith.constant 0 : i32
    %c0_i32_0 = arith.constant 0 : i32
    %c0_i32_1 = arith.constant 0 : i32
    %c0_i32_2 = arith.constant 0 : i32
    return %c0_i32, %c0_i32_0, %c0_i32_1 : i32, i32, i32
  }
  func.func @transform_9(%arg0: i32) -> (i32, i32, i32) {
    %c0_i32 = arith.constant 0 : i32
    %c0_i32_0 = arith.constant 0 : i32
    %c0_i32_1 = arith.constant 0 : i32
    %c0_i32_2 = arith.constant 0 : i32
    return %c0_i32, %c0_i32_0, %c0_i32_1 : i32, i32, i32
  }
  func.func @transform_10(%arg0: i32) -> (i32, i32, i32) {
    %c0_i32 = arith.constant 0 : i32
    %c0_i32_0 = arith.constant 0 : i32
    %c0_i32_1 = arith.constant 0 : i32
    %c0_i32_2 = arith.constant 0 : i32
    return %c0_i32, %c0_i32_0, %c0_i32_1 : i32, i32, i32
  }
  func.func @transform_11(%arg0: i32) -> (i32, i32, i32) {
    %c0_i32 = arith.constant 0 : i32
    %c0_i32_0 = arith.constant 0 : i32
    %c0_i32_1 = arith.constant 0 : i32
    %c0_i32_2 = arith.constant 0 : i32
    return %c0_i32, %c0_i32_0, %c0_i32_1 : i32, i32, i32
  }
  func.func @transform_12(%arg0: i32) -> (i32, i32, i32) {
    %c0_i32 = arith.constant 0 : i32
    %c0_i32_0 = arith.constant 0 : i32
    %c0_i32_1 = arith.constant 0 : i32
    %c0_i32_2 = arith.constant 0 : i32
    return %c0_i32, %c0_i32_0, %c0_i32_1 : i32, i32, i32
  }
  func.func @transform_13(%arg0: i32) -> (i32, i32, i32) {
    %c0_i32 = arith.constant 0 : i32
    %c0_i32_0 = arith.constant 0 : i32
    %c0_i32_1 = arith.constant 0 : i32
    %c0_i32_2 = arith.constant 0 : i32
    return %c0_i32, %c0_i32_0, %c0_i32_1 : i32, i32, i32
  }
  func.func @transform_14(%arg0: i32) -> (i32, i32, i32) {
    %c0_i32 = arith.constant 0 : i32
    %c0_i32_0 = arith.constant 0 : i32
    %c0_i32_1 = arith.constant 0 : i32
    %c0_i32_2 = arith.constant 0 : i32
    return %c0_i32, %c0_i32_0, %c0_i32_1 : i32, i32, i32
  }
  func.func @transform_15(%arg0: i32) -> (i32, i32, i32) {
    %c0_i32 = arith.constant 0 : i32
    %c0_i32_0 = arith.constant 0 : i32
    %c0_i32_1 = arith.constant 0 : i32
    %c0_i32_2 = arith.constant 0 : i32
    return %c0_i32, %c0_i32_0, %c0_i32_1 : i32, i32, i32
  }
  func.func @transform_16(%arg0: i32) -> (i32, i32, i32) {
    %c0_i32 = arith.constant 0 : i32
    %c0_i32_0 = arith.constant 0 : i32
    %c0_i32_1 = arith.constant 0 : i32
    %c0_i32_2 = arith.constant 0 : i32
    return %c0_i32, %c0_i32_0, %c0_i32_1 : i32, i32, i32
  }
  func.func @transform_17(%arg0: i32) -> (i32, i32, i32) {
    %c0_i32 = arith.constant 0 : i32
    %c0_i32_0 = arith.constant 0 : i32
    %c0_i32_1 = arith.constant 0 : i32
    %c0_i32_2 = arith.constant 0 : i32
    return %c0_i32, %c0_i32_0, %c0_i32_1 : i32, i32, i32
  }
  func.func @transform_18(%arg0: i32) -> (i32, i32, i32) {
    %c0_i32 = arith.constant 0 : i32
    %c0_i32_0 = arith.constant 0 : i32
    %c0_i32_1 = arith.constant 0 : i32
    %c0_i32_2 = arith.constant 0 : i32
    return %c0_i32, %c0_i32_0, %c0_i32_1 : i32, i32, i32
  }
  func.func @transform_19(%arg0: i32) -> (i32, i32, i32) {
    %c0_i32 = arith.constant 0 : i32
    %c0_i32_0 = arith.constant 0 : i32
    %c0_i32_1 = arith.constant 0 : i32
    %c0_i32_2 = arith.constant 0 : i32
    return %c0_i32, %c0_i32_0, %c0_i32_1 : i32, i32, i32
  }
  func.func @transform_20(%arg0: i32) -> (i32, i32, i32) {
    %c0_i32 = arith.constant 0 : i32
    %c0_i32_0 = arith.constant 0 : i32
    %c0_i32_1 = arith.constant 0 : i32
    %c0_i32_2 = arith.constant 0 : i32
    return %c0_i32, %c0_i32_0, %c0_i32_1 : i32, i32, i32
  }
  func.func @transform_21(%arg0: i32) -> (i32, i32, i32) {
    %c0_i32 = arith.constant 0 : i32
    %c0_i32_0 = arith.constant 0 : i32
    %c0_i32_1 = arith.constant 0 : i32
    %c0_i32_2 = arith.constant 0 : i32
    return %c0_i32, %c0_i32_0, %c0_i32_1 : i32, i32, i32
  }
  func.func @transform_22(%arg0: i32) -> (i32, i32) {
    %c0_i32 = arith.constant 0 : i32
    %c0_i32_0 = arith.constant 0 : i32
    %c0_i32_1 = arith.constant 0 : i32
    return %c0_i32, %c0_i32_0 : i32, i32
  }
  func.func @transform_23(%arg0: i32) -> (i32, i32) {
    %c0_i32 = arith.constant 0 : i32
    %c0_i32_0 = arith.constant 0 : i32
    %c0_i32_1 = arith.constant 0 : i32
    return %c0_i32, %c0_i32_0 : i32, i32
  }
  func.func @transform_24(%arg0: i32) -> (i32, i32) {
    %c0_i32 = arith.constant 0 : i32
    %c0_i32_0 = arith.constant 0 : i32
    %c0_i32_1 = arith.constant 0 : i32
    return %c0_i32, %c0_i32_0 : i32, i32
  }
  func.func @transform_25(%arg0: i32) -> (i32, i32) {
    %c0_i32 = arith.constant 0 : i32
    %c0_i32_0 = arith.constant 0 : i32
    %c0_i32_1 = arith.constant 0 : i32
    return %c0_i32, %c0_i32_0 : i32, i32
  }
  func.func @transform_26(%arg0: i32) -> (i32, i32) {
    %c0_i32 = arith.constant 0 : i32
    %c0_i32_0 = arith.constant 0 : i32
    %c0_i32_1 = arith.constant 0 : i32
    return %c0_i32, %c0_i32_0 : i32, i32
  }
}

</mosaic_0001>

<llo_original>
// kernel: tpu_custom_call.1
$region0: #{tpu_custom_call.1}
  #allocation0 [shape = 'u32[]', space=smem, size = 0x4, offset = 0x4, fixed_abs, tag = 'smem constant byte address 0x4 - core index']
  #allocation1 [shape = 'u32[72,128]{1,0:T(1,128)}', space=vmem, size = 0x9000, scoped, tag = 'internal scratch']
  %s0 = inlined_call_operand.hbm [shape: f32[16,32], index: 0, kind: input, shape index: {}]
  %s1 = inlined_call_operand.vmem [shape: f32[16,1], index: 1, kind: input, shape index: {}]
  %s2 = inlined_call_operand.hbm [shape: f32[16,32], index: 2, kind: input, shape index: {}]
  %s3 = inlined_call_operand.hbm [shape: f32[16,64], index: 3, kind: input, shape index: {}]
  %s4 = inlined_call_operand.hbm [shape: f32[4,1,32], index: 4, kind: input, shape index: {}]
  %s5 = inlined_call_operand.vmem [shape: f32[64,64], index: 5, kind: input, shape index: {}]
  %s6 = inlined_call_operand.vmem [shape: f32[2,32,32], index: 6, kind: input, shape index: {}]
  %s7 = inlined_call_operand.vmem [shape: f32[2,1,32], index: 7, kind: input, shape index: {}]
  %s8 = inlined_call_operand.vmem [shape: f32[2,32,32], index: 8, kind: input, shape index: {}]
  %s9 = inlined_call_operand.hbm [shape: f32[2,1,32], index: 9, kind: input, shape index: {}]
  %s10 = inlined_call_operand.hbm [shape: f32[2,32,32], index: 10, kind: input, shape index: {}]
  %s11 = inlined_call_operand.hbm [shape: f32[2,1,32], index: 11, kind: input, shape index: {}]
  %s12 = inlined_call_operand.hbm [shape: f32[2,32,32], index: 12, kind: input, shape index: {}]
  %s13 = inlined_call_operand.hbm [shape: f32[2,1,32], index: 13, kind: input, shape index: {}]
  %s14 = inlined_call_operand.hbm [shape: f32[2,1,32], index: 14, kind: input, shape index: {}]
  %s15 = inlined_call_operand.hbm [shape: f32[2,1,32], index: 15, kind: input, shape index: {}]
  %s16 = inlined_call_operand.hbm [shape: f32[2,32,64], index: 16, kind: input, shape index: {}]
  %s17 = inlined_call_operand.hbm [shape: f32[2,1,64], index: 17, kind: input, shape index: {}]
  %s18 = inlined_call_operand.vmem [shape: f32[2,64,32], index: 18, kind: input, shape index: {}]
  %s19 = inlined_call_operand.hbm [shape: f32[2,1,32], index: 19, kind: input, shape index: {}]
  %s20 = inlined_call_operand.hbm [shape: f32[2,1,32], index: 20, kind: input, shape index: {}]
  %s21 = inlined_call_operand.vmem [shape: f32[2,1,32], index: 21, kind: input, shape index: {}]
  %s22 = inlined_call_operand.vmem [shape: f32[1,32], index: 22, kind: input, shape index: {}]
  %s23 = inlined_call_operand.hbm [shape: f32[1,32], index: 23, kind: input, shape index: {}]
  %s24 = inlined_call_operand.vmem [shape: f32[32,3], index: 24, kind: input, shape index: {}]
  %s25 = inlined_call_operand.vmem [shape: f32[1,3], index: 25, kind: input, shape index: {}]
  %s26 = inlined_call_operand.vmem [shape: f32[16,3], index: 26, kind: output, shape index: {}]
  %s27 = sld [smem:[#allocation0]]
  $region178: #{tpu_custom_call.1} parent=0
    _
  %s29 = ssub.s32 1, %s27
  %s30 = scalar_select 0, %s29, %s27
  $region1: #{tpu_custom_call.1} parent=0
    #allocation2 [shape = 'u8[8192]{0}', space=vmem, size = 0x2000, scoped, tag = 'input window, operand 0, single buffered']
    #allocation3 [shape = 's32[1]{0}', space=sflag, size = 0x4, scoped, tag = 'scoped memory for tpu_custom_call.1']
    #allocation4 [shape = 'u8[8192]{0}', space=vmem, size = 0x2000, scoped, tag = 'input window, operand 2, single buffered']
    #allocation5 [shape = 's32[1]{0}', space=sflag, size = 0x4, scoped, tag = 'scoped memory for tpu_custom_call.1']
    #allocation6 [shape = 'u8[8192]{0}', space=vmem, size = 0x2000, scoped, tag = 'input window, operand 3, single buffered']
    #allocation7 [shape = 'u8[2048]{0}', space=vmem, size = 0x800, scoped, tag = 'input window, operand 4, single buffered']
    #allocation8 [shape = 's32[1]{0}', space=sflag, size = 0x4, scoped, tag = 'scoped memory for tpu_custom_call.1']
    #allocation9 [shape = 'u8[1024]{0}', space=vmem, size = 0x400, scoped, tag = 'input window, operand 9, single buffered']
    #allocation10 [shape = 'u8[32768]{0}', space=vmem, size = 0x8000, scoped, tag = 'input window, operand 10, single buffered']
    #allocation11 [shape = 's32[1]{0}', space=sflag, size = 0x4, scoped, tag = 'scoped memory for tpu_custom_call.1']
    #allocation12 [shape = 'u8[1024]{0}', space=vmem, size = 0x400, scoped, tag = 'input window, operand 11, single buffered']
    #allocation13 [shape = 'u8[32768]{0}', space=vmem, size = 0x8000, scoped, tag = 'input window, operand 12, single buffered']
    #allocation14 [shape = 's32[1]{0}', space=sflag, size = 0x4, scoped, tag = 'scoped memory for tpu_custom_call.1']
    #allocation15 [shape = 'u8[1024]{0}', space=vmem, size = 0x400, scoped, tag = 'input window, operand 13, single buffered']
    #allocation16 [shape = 'u8[1024]{0}', space=vmem, size = 0x400, scoped, tag = 'input window, operand 14, single buffered']
    #allocation17 [shape = 's32[1]{0}', space=sflag, size = 0x4, scoped, tag = 'scoped memory for tpu_custom_call.1']
    #allocation18 [shape = 'u8[1024]{0}', space=vmem, size = 0x400, scoped, tag = 'input window, operand 15, single buffered']
    #allocation19 [shape = 'u8[32768]{0}', space=vmem, size = 0x8000, scoped, tag = 'input window, operand 16, single buffered']
    #allocation20 [shape = 's32[1]{0}', space=sflag, size = 0x4, scoped, tag = 'scoped memory for tpu_custom_call.1']
    #allocation21 [shape = 'u8[1024]{0}', space=vmem, size = 0x400, scoped, tag = 'input window, operand 17, single buffered']
    #allocation22 [shape = 'u8[1024]{0}', space=vmem, size = 0x400, scoped, tag = 'input window, operand 19, single buffered']
    #allocation23 [shape = 's32[1]{0}', space=sflag, size = 0x4, scoped, tag = 'scoped memory for tpu_custom_call.1']
    #allocation24 [shape = 'u8[1024]{0}', space=vmem, size = 0x400, scoped, tag = 'input window, operand 20, single buffered']
    #allocation25 [shape = 'u8[512]{0}', space=vmem, size = 0x400, scoped, tag = 'input window, operand 23, single buffered']
    #allocation26 [shape = 's32[1]{0}', space=sflag, size = 0x4, scoped, tag = 'scoped memory for tpu_custom_call.1']
    %31 = vsyncpa [#allocation3], 0
    %32 = vsyncpa [#allocation5], 0
    %33 = vsyncpa [#allocation8], 0
    %34 = vsyncpa [#allocation11], 0
    %35 = vsyncpa [#allocation14], 0
    %36 = vsyncpa [#allocation17], 0
    %37 = vsyncpa [#allocation20], 0
    %38 = vsyncpa [#allocation23], 0
    %39 = vsyncpa [#allocation26], 0
    // Predicated region
    $region2: #{tpu_custom_call.1} parent=1 // pred_check
      _
    $region3: #{tpu_custom_call.1} parent=1 // pred_check_branch
      %41 = sbr.rel (0) target = $region5
    $region4: #{tpu_custom_call.1} parent=1 // pred_region
      %43 = vsyncadd [#allocation3], 0
      %s44 = sshll.u32 %s0, 4
      %s45 = int_to_ptr.hbm [resolvable:$true] %s44
      %s46 = sshll.u32 [#allocation2], 4
      %s47 = int_to_ptr.vmem [resolvable:$true] %s46
      %52 = dma.hbm_to_vmem [thread:$0]  %s45, 256, %s47, [#allocation3], 128, 128, 8
    $region5: #{tpu_custom_call.1} parent=1 // pred_fallthru
      _
    // Predicated region
    $region6: #{tpu_custom_call.1} parent=1 // pred_check
      _
    $region7: #{tpu_custom_call.1} parent=1 // pred_check_branch
      %54 = sbr.rel (0) target = $region9
    $region8: #{tpu_custom_call.1} parent=1 // pred_region
      _
    $region9: #{tpu_custom_call.1} parent=1 // pred_fallthru
      _
    // Predicated region
    $region10: #{tpu_custom_call.1} parent=1 // pred_check
      _
    $region11: #{tpu_custom_call.1} parent=1 // pred_check_branch
      %56 = sbr.rel (0) target = $region13
    $region12: #{tpu_custom_call.1} parent=1 // pred_region
      %58 = vsyncadd [#allocation5], 0
      %s59 = sshll.u32 %s2, 4
      %s60 = int_to_ptr.hbm [resolvable:$true] %s59
      %s61 = sshll.u32 [#allocation4], 4
      %s62 = int_to_ptr.vmem [resolvable:$true] %s61
      %67 = dma.hbm_to_vmem [thread:$0]  %s60, 256, %s62, [#allocation5], 128, 128, 8
    $region13: #{tpu_custom_call.1} parent=1 // pred_fallthru
      _
    // Predicated region
    $region14: #{tpu_custom_call.1} parent=1 // pred_check
      _
    $region15: #{tpu_custom_call.1} parent=1 // pred_check_branch
      %69 = sbr.rel (0) target = $region17
    $region16: #{tpu_custom_call.1} parent=1 // pred_region
      %71 = vsyncadd [#allocation5], 0
      %s72 = sshll.u32 %s3, 4
      %s73 = int_to_ptr.hbm [resolvable:$true] %s72
      %s74 = sshll.u32 [#allocation6], 4
      %s75 = int_to_ptr.vmem [resolvable:$true] %s74
      %80 = dma.hbm_to_vmem [thread:$0]  %s73, 256, %s75, [#allocation5], 128, 128, 8
    $region17: #{tpu_custom_call.1} parent=1 // pred_fallthru
      _
    // Predicated region
    $region18: #{tpu_custom_call.1} parent=1 // pred_check
      _
    $region19: #{tpu_custom_call.1} parent=1 // pred_check_branch
      %82 = sbr.rel (0) target = $region21
    $region20: #{tpu_custom_call.1} parent=1 // pred_region
      %84 = vsyncadd [#allocation8], 0
      %s85 = sshll.u32 %s4, 4
      %s86 = int_to_ptr.hbm [resolvable:$true] %s85
      %s87 = sshll.u32 [#allocation7], 4
      %s88 = int_to_ptr.vmem [resolvable:$true] %s87
      %93 = dma.hbm_to_vmem [thread:$0]  %s86, 64, %s88, [#allocation8], 16, 16, 1
    $region21: #{tpu_custom_call.1} parent=1 // pred_fallthru
      _
    // Predicated region
    $region22: #{tpu_custom_call.1} parent=1 // pred_check
      _
    $region23: #{tpu_custom_call.1} parent=1 // pred_check_branch
      %95 = sbr.rel (0) target = $region25
    $region24: #{tpu_custom_call.1} parent=1 // pred_region
      _
    $region25: #{tpu_custom_call.1} parent=1 // pred_fallthru
      _
    // Predicated region
    $region26: #{tpu_custom_call.1} parent=1 // pred_check
      _
    $region27: #{tpu_custom_call.1} parent=1 // pred_check_branch
      %97 = sbr.rel (0) target = $region29
    $region28: #{tpu_custom_call.1} parent=1 // pred_region
      _
    $region29: #{tpu_custom_call.1} parent=1 // pred_fallthru
      _
    // Predicated region
    $region30: #{tpu_custom_call.1} parent=1 // pred_check
      _
    $region31: #{tpu_custom_call.1} parent=1 // pred_check_branch
      %99 = sbr.rel (0) target = $region33
    $region32: #{tpu_custom_call.1} parent=1 // pred_region
      _
    $region33: #{tpu_custom_call.1} parent=1 // pred_fallthru
      _
    // Predicated region
    $region34: #{tpu_custom_call.1} parent=1 // pred_check
      _
    $region35: #{tpu_custom_call.1} parent=1 // pred_check_branch
      %101 = sbr.rel (0) target = $region37
    $region36: #{tpu_custom_call.1} parent=1 // pred_region
      _
    $region37: #{tpu_custom_call.1} parent=1 // pred_fallthru
      _
    // Predicated region
    $region38: #{tpu_custom_call.1} parent=1 // pred_check
      _
    $region39: #{tpu_custom_call.1} parent=1 // pred_check_branch
      %103 = sbr.rel (0) target = $region41
    $region40: #{tpu_custom_call.1} parent=1 // pred_region
      %105 = vsyncadd [#allocation8], 0
      %s106 = sshll.u32 %s9, 4
      %s107 = int_to_ptr.hbm [resolvable:$true] %s106
      %s108 = sshll.u32 [#allocation9], 4
      %s109 = int_to_ptr.vmem [resolvable:$true] %s108
      %114 = dma.hbm_to_vmem [thread:$0]  %s107, 32, %s109, [#allocation8], 16, 16, 1
    $region41: #{tpu_custom_call.1} parent=1 // pred_fallthru
      _
    // Predicated region
    $region42: #{tpu_custom_call.1} parent=1 // pred_check
      _
    $region43: #{tpu_custom_call.1} parent=1 // pred_check_branch
      %116 = sbr.rel (0) target = $region45
    $region44: #{tpu_custom_call.1} parent=1 // pred_region
      %118 = vsyncadd [#allocation11], 0
      %s119 = sshll.u32 %s10, 4
      %s120 = int_to_ptr.hbm [resolvable:$true] %s119
      %s121 = sshll.u32 [#allocation10], 4
      %s122 = int_to_ptr.vmem [resolvable:$true] %s121
      %127 = dma.hbm_to_vmem [thread:$0]  %s120, 1024, %s122, [#allocation11], 128, 128, 8
    $region45: #{tpu_custom_call.1} parent=1 // pred_fallthru
      _
    // Predicated region
    $region46: #{tpu_custom_call.1} parent=1 // pred_check
      _
    $region47: #{tpu_custom_call.1} parent=1 // pred_check_branch
      %129 = sbr.rel (0) target = $region49
    $region48: #{tpu_custom_call.1} parent=1 // pred_region
      %131 = vsyncadd [#allocation11], 0
      %s132 = sshll.u32 %s11, 4
      %s133 = int_to_ptr.hbm [resolvable:$true] %s132
      %s134 = sshll.u32 [#allocation12], 4
      %s135 = int_to_ptr.vmem [resolvable:$true] %s134
      %140 = dma.hbm_to_vmem [thread:$0]  %s133, 32, %s135, [#allocation11], 16, 16, 1
    $region49: #{tpu_custom_call.1} parent=1 // pred_fallthru
      _
    // Predicated region
    $region50: #{tpu_custom_call.1} parent=1 // pred_check
      _
    $region51: #{tpu_custom_call.1} parent=1 // pred_check_branch
      %142 = sbr.rel (0) target = $region53
    $region52: #{tpu_custom_call.1} parent=1 // pred_region
      %144 = vsyncadd [#allocation14], 0
      %s145 = sshll.u32 %s12, 4
      %s146 = int_to_ptr.hbm [resolvable:$true] %s145
      %s147 = sshll.u32 [#allocation13], 4
      %s148 = int_to_ptr.vmem [resolvable:$true] %s147
      %153 = dma.hbm_to_vmem [thread:$0]  %s146, 1024, %s148, [#allocation14], 128, 128, 8
    $region53: #{tpu_custom_call.1} parent=1 // pred_fallthru
      _
    // Predicated region
    $region54: #{tpu_custom_call.1} parent=1 // pred_check
      _
    $region55: #{tpu_custom_call.1} parent=1 // pred_check_branch
      %155 = sbr.rel (0) target = $region57
    $region56: #{tpu_custom_call.1} parent=1 // pred_region
      %157 = vsyncadd [#allocation14], 0
      %s158 = sshll.u32 %s13, 4
      %s159 = int_to_ptr.hbm [resolvable:$true] %s158
      %s160 = sshll.u32 [#allocation15], 4
      %s161 = int_to_ptr.vmem [resolvable:$true] %s160
      %166 = dma.hbm_to_vmem [thread:$0]  %s159, 32, %s161, [#allocation14], 16, 16, 1
    $region57: #{tpu_custom_call.1} parent=1 // pred_fallthru
      _
    // Predicated region
    $region58: #{tpu_custom_call.1} parent=1 // pred_check
      _
    $region59: #{tpu_custom_call.1} parent=1 // pred_check_branch
      %168 = sbr.rel (0) target = $region61
    $region60: #{tpu_custom_call.1} parent=1 // pred_region
      %170 = vsyncadd [#allocation17], 0
      %s171 = sshll.u32 %s14, 4
      %s172 = int_to_ptr.hbm [resolvable:$true] %s171
      %s173 = sshll.u32 [#allocation16], 4
      %s174 = int_to_ptr.vmem [resolvable:$true] %s173
      %179 = dma.hbm_to_vmem [thread:$0]  %s172, 32, %s174, [#allocation17], 16, 16, 1
    $region61: #{tpu_custom_call.1} parent=1 // pred_fallthru
      _
    // Predicated region
    $region62: #{tpu_custom_call.1} parent=1 // pred_check
      _
    $region63: #{tpu_custom_call.1} parent=1 // pred_check_branch
      %181 = sbr.rel (0) target = $region65
    $region64: #{tpu_custom_call.1} parent=1 // pred_region
      %183 = vsyncadd [#allocation17], 0
      %s184 = sshll.u32 %s15, 4
      %s185 = int_to_ptr.hbm [resolvable:$true] %s184
      %s186 = sshll.u32 [#allocation18], 4
      %s187 = int_to_ptr.vmem [resolvable:$true] %s186
      %192 = dma.hbm_to_vmem [thread:$0]  %s185, 32, %s187, [#allocation17], 16, 16, 1
    $region65: #{tpu_custom_call.1} parent=1 // pred_fallthru
      _
    // Predicated region
    $region66: #{tpu_custom_call.1} parent=1 // pred_check
      _
    $region67: #{tpu_custom_call.1} parent=1 // pred_check_branch
      %194 = sbr.rel (0) target = $region69
    $region68: #{tpu_custom_call.1} parent=1 // pred_region
      %196 = vsyncadd [#allocation20], 0
      %s197 = sshll.u32 %s16, 4
      %s198 = int_to_ptr.hbm [resolvable:$true] %s197
      %s199 = sshll.u32 [#allocation19], 4
      %s200 = int_to_ptr.vmem [resolvable:$true] %s199
      %205 = dma.hbm_to_vmem [thread:$0]  %s198, 1024, %s200, [#allocation20], 128, 128, 8
    $region69: #{tpu_custom_call.1} parent=1 // pred_fallthru
      _
    // Predicated region
    $region70: #{tpu_custom_call.1} parent=1 // pred_check
      _
    $region71: #{tpu_custom_call.1} parent=1 // pred_check_branch
      %207 = sbr.rel (0) target = $region73
    $region72: #{tpu_custom_call.1} parent=1 // pred_region
      %209 = vsyncadd [#allocation20], 0
      %s210 = sshll.u32 %s17, 4
      %s211 = int_to_ptr.hbm [resolvable:$true] %s210
      %s212 = sshll.u32 [#allocation21], 4
      %s213 = int_to_ptr.vmem [resolvable:$true] %s212
      %218 = dma.hbm_to_vmem [thread:$0]  %s211, 32, %s213, [#allocation20], 16, 16, 1
    $region73: #{tpu_custom_call.1} parent=1 // pred_fallthru
      _
    // Predicated region
    $region74: #{tpu_custom_call.1} parent=1 // pred_check
      _
    $region75: #{tpu_custom_call.1} parent=1 // pred_check_branch
      %220 = sbr.rel (0) target = $region77
    $region76: #{tpu_custom_call.1} parent=1 // pred_region
      _
    $region77: #{tpu_custom_call.1} parent=1 // pred_fallthru
      _
    // Predicated region
    $region78: #{tpu_custom_call.1} parent=1 // pred_check
      _
    $region79: #{tpu_custom_call.1} parent=1 // pred_check_branch
      %222 = sbr.rel (0) target = $region81
    $region80: #{tpu_custom_call.1} parent=1 // pred_region
      %224 = vsyncadd [#allocation23], 0
      %s225 = sshll.u32 %s19, 4
      %s226 = int_to_ptr.hbm [resolvable:$true] %s225
      %s227 = sshll.u32 [#allocation22], 4
      %s228 = int_to_ptr.vmem [resolvable:$true] %s227
      %233 = dma.hbm_to_vmem [thread:$0]  %s226, 32, %s228, [#allocation23], 16, 16, 1
    $region81: #{tpu_custom_call.1} parent=1 // pred_fallthru
      _
    // Predicated region
    $region82: #{tpu_custom_call.1} parent=1 // pred_check
      _
    $region83: #{tpu_custom_call.1} parent=1 // pred_check_branch
      %235 = sbr.rel (0) target = $region85
    $region84: #{tpu_custom_call.1} parent=1 // pred_region
      %237 = vsyncadd [#allocation23], 0
      %s238 = sshll.u32 %s20, 4
      %s239 = int_to_ptr.hbm [resolvable:$true] %s238
      %s240 = sshll.u32 [#allocation24], 4
      %s241 = int_to_ptr.vmem [resolvable:$true] %s240
      %246 = dma.hbm_to_vmem [thread:$0]  %s239, 32, %s241, [#allocation23], 16, 16, 1
    $region85: #{tpu_custom_call.1} parent=1 // pred_fallthru
      _
    // Predicated region
    $region86: #{tpu_custom_call.1} parent=1 // pred_check
      _
    $region87: #{tpu_custom_call.1} parent=1 // pred_check_branch
      %248 = sbr.rel (0) target = $region89
    $region88: #{tpu_custom_call.1} parent=1 // pred_region
      _
    $region89: #{tpu_custom_call.1} parent=1 // pred_fallthru
      _
    // Predicated region
    $region90: #{tpu_custom_call.1} parent=1 // pred_check
      _
    $region91: #{tpu_custom_call.1} parent=1 // pred_check_branch
      %250 = sbr.rel (0) target = $region93
    $region92: #{tpu_custom_call.1} parent=1 // pred_region
      _
    $region93: #{tpu_custom_call.1} parent=1 // pred_fallthru
      _
    // Predicated region
    $region94: #{tpu_custom_call.1} parent=1 // pred_check
      _
    $region95: #{tpu_custom_call.1} parent=1 // pred_check_branch
      %252 = sbr.rel (0) target = $region97
    $region96: #{tpu_custom_call.1} parent=1 // pred_region
      %254 = vsyncadd [#allocation26], 0
      %s256 = sshll.u32 %s23, 4
      %s257 = int_to_ptr.hbm [resolvable:$true] %s256
      %s258 = sshll.u32 [#allocation25], 4
      %s259 = int_to_ptr.vmem [resolvable:$true] %s258
      %261 = dma.hbm_to_vmem [thread:$0]  %s257, 16, %s259, [#allocation26]
    $region97: #{tpu_custom_call.1} parent=1 // pred_fallthru
      _
    // Predicated region
    $region98: #{tpu_custom_call.1} parent=1 // pred_check
      _
    $region99: #{tpu_custom_call.1} parent=1 // pred_check_branch
      %263 = sbr.rel (0) target = $region101
    $region100: #{tpu_custom_call.1} parent=1 // pred_region
      _
    $region101: #{tpu_custom_call.1} parent=1 // pred_fallthru
      _
    // Predicated region
    $region102: #{tpu_custom_call.1} parent=1 // pred_check
      _
    $region103: #{tpu_custom_call.1} parent=1 // pred_check_branch
      %265 = sbr.rel (0) target = $region105
    $region104: #{tpu_custom_call.1} parent=1 // pred_region
      _
    $region105: #{tpu_custom_call.1} parent=1 // pred_fallthru
      _
    // Predicated region
    $region106: #{tpu_custom_call.1} parent=1 // pred_check
      _
    $region107: #{tpu_custom_call.1} parent=1 // pred_check_branch
      %267 = sbr.rel (0) target = $region109
    $region108: #{tpu_custom_call.1} parent=1 // pred_region
      %269 = dma.done [#allocation3], 256
    $region109: #{tpu_custom_call.1} parent=1 // pred_fallthru
      _
    // Predicated region
    $region110: #{tpu_custom_call.1} parent=1 // pred_check
      _
    $region111: #{tpu_custom_call.1} parent=1 // pred_check_branch
      %271 = sbr.rel (0) target = $region113
    $region112: #{tpu_custom_call.1} parent=1 // pred_region
      %273 = dma.done [#allocation5], 256
    $region113: #{tpu_custom_call.1} parent=1 // pred_fallthru
      _
    // Predicated region
    $region114: #{tpu_custom_call.1} parent=1 // pred_check
      _
    $region115: #{tpu_custom_call.1} parent=1 // pred_check_branch
      %275 = sbr.rel (0) target = $region117
    $region116: #{tpu_custom_call.1} parent=1 // pred_region
      %277 = dma.done [#allocation5], 256
    $region117: #{tpu_custom_call.1} parent=1 // pred_fallthru
      _
    // Predicated region
    $region118: #{tpu_custom_call.1} parent=1 // pred_check
      _
    $region119: #{tpu_custom_call.1} parent=1 // pred_check_branch
      %279 = sbr.rel (0) target = $region121
    $region120: #{tpu_custom_call.1} parent=1 // pred_region
      %281 = dma.done [#allocation8], 64
    $region121: #{tpu_custom_call.1} parent=1 // pred_fallthru
      _
    // Predicated region
    $region122: #{tpu_custom_call.1} parent=1 // pred_check
      _
    $region123: #{tpu_custom_call.1} parent=1 // pred_check_branch
      %283 = sbr.rel (0) target = $region125
    $region124: #{tpu_custom_call.1} parent=1 // pred_region
      %285 = dma.done [#allocation8], 32
    $region125: #{tpu_custom_call.1} parent=1 // pred_fallthru
      _
    // Predicated region
    $region126: #{tpu_custom_call.1} parent=1 // pred_check
      _
    $region127: #{tpu_custom_call.1} parent=1 // pred_check_branch
      %287 = sbr.rel (0) target = $region129
    $region128: #{tpu_custom_call.1} parent=1 // pred_region
      %289 = dma.done [#allocation11], 1024
    $region129: #{tpu_custom_call.1} parent=1 // pred_fallthru
      _
    // Predicated region
    $region130: #{tpu_custom_call.1} parent=1 // pred_check
      _
    $region131: #{tpu_custom_call.1} parent=1 // pred_check_branch
      %291 = sbr.rel (0) target = $region133
    $region132: #{tpu_custom_call.1} parent=1 // pred_region
      %293 = dma.done [#allocation11], 32
    $region133: #{tpu_custom_call.1} parent=1 // pred_fallthru
      _
    // Predicated region
    $region134: #{tpu_custom_call.1} parent=1 // pred_check
      _
    $region135: #{tpu_custom_call.1} parent=1 // pred_check_branch
      %295 = sbr.rel (0) target = $region137
    $region136: #{tpu_custom_call.1} parent=1 // pred_region
      %297 = dma.done [#allocation14], 1024
    $region137: #{tpu_custom_call.1} parent=1 // pred_fallthru
      _
    // Predicated region
    $region138: #{tpu_custom_call.1} parent=1 // pred_check
      _
    $region139: #{tpu_custom_call.1} parent=1 // pred_check_branch
      %299 = sbr.rel (0) target = $region141
    $region140: #{tpu_custom_call.1} parent=1 // pred_region
      %301 = dma.done [#allocation14], 32
    $region141: #{tpu_custom_call.1} parent=1 // pred_fallthru
      _
    // Predicated region
    $region142: #{tpu_custom_call.1} parent=1 // pred_check
      _
    $region143: #{tpu_custom_call.1} parent=1 // pred_check_branch
      %303 = sbr.rel (0) target = $region145
    $region144: #{tpu_custom_call.1} parent=1 // pred_region
      %305 = dma.done [#allocation17], 32
    $region145: #{tpu_custom_call.1} parent=1 // pred_fallthru
      _
    // Predicated region
    $region146: #{tpu_custom_call.1} parent=1 // pred_check
      _
    $region147: #{tpu_custom_call.1} parent=1 // pred_check_branch
      %307 = sbr.rel (0) target = $region149
    $region148: #{tpu_custom_call.1} parent=1 // pred_region
      %309 = dma.done [#allocation17], 32
    $region149: #{tpu_custom_call.1} parent=1 // pred_fallthru
      _
    // Predicated region
    $region150: #{tpu_custom_call.1} parent=1 // pred_check
      _
    $region151: #{tpu_custom_call.1} parent=1 // pred_check_branch
      %311 = sbr.rel (0) target = $region153
    $region152: #{tpu_custom_call.1} parent=1 // pred_region
      %313 = dma.done [#allocation20], 1024
    $region153: #{tpu_custom_call.1} parent=1 // pred_fallthru
      _
    // Predicated region
    $region154: #{tpu_custom_call.1} parent=1 // pred_check
      _
    $region155: #{tpu_custom_call.1} parent=1 // pred_check_branch
      %315 = sbr.rel (0) target = $region157
    $region156: #{tpu_custom_call.1} parent=1 // pred_region
      %317 = dma.done [#allocation20], 32
    $region157: #{tpu_custom_call.1} parent=1 // pred_fallthru
      _
    // Predicated region
    $region158: #{tpu_custom_call.1} parent=1 // pred_check
      _
    $region159: #{tpu_custom_call.1} parent=1 // pred_check_branch
      %319 = sbr.rel (0) target = $region161
    $region160: #{tpu_custom_call.1} parent=1 // pred_region
      %321 = dma.done [#allocation23], 32
    $region161: #{tpu_custom_call.1} parent=1 // pred_fallthru
      _
    // Predicated region
    $region162: #{tpu_custom_call.1} parent=1 // pred_check
      _
    $region163: #{tpu_custom_call.1} parent=1 // pred_check_branch
      %323 = sbr.rel (0) target = $region165
    $region164: #{tpu_custom_call.1} parent=1 // pred_region
      %325 = dma.done [#allocation23], 32
    $region165: #{tpu_custom_call.1} parent=1 // pred_fallthru
      _
    // Predicated region
    $region166: #{tpu_custom_call.1} parent=1 // pred_check
      _
    $region167: #{tpu_custom_call.1} parent=1 // pred_check_branch
      %327 = sbr.rel (0) target = $region169
    $region168: #{tpu_custom_call.1} parent=1 // pred_region
      %329 = dma.done [#allocation26], 16
    $region169: #{tpu_custom_call.1} parent=1 // pred_fallthru
      _
    %v330 = vld [vmem:[%s1] sm:$0xff]
    %v331 = vld [vmem:[%s1 + $0x8] sm:$0xff]
    %v332 = vld [vmem:[#allocation6] sm:$0xff]
    %v333 = vld [vmem:[#allocation6 + $0x8] sm:$0xff]
    %v334 = vld [vmem:[#allocation7] sm:$0x1]
    %v335 = vld [vmem:[#allocation7 + $0x1] sm:$0x1]
    %v336 = vld [vmem:[#allocation7 + $0x2] sm:$0x1]
    %v337 = vld [vmem:[#allocation7 + $0x3] sm:$0x1]
    %v338 = vld [vmem:[%s5] sm:$0xff]
    %v339 = vld [vmem:[%s5 + $0x8] sm:$0xff]
    %v340 = vld [vmem:[%s5 + $0x10] sm:$0xff]
    %v341 = vld [vmem:[%s5 + $0x18] sm:$0xff]
    %v342 = vld [vmem:[%s5 + $0x20] sm:$0xff]
    %v343 = vld [vmem:[%s5 + $0x28] sm:$0xff]
    %v344 = vld [vmem:[%s5 + $0x30] sm:$0xff]
    %v345 = vld [vmem:[%s5 + $0x38] sm:$0xff]
    %v346 = vld [vmem:[#allocation2] sm:$0xff]
    %v347 = vld [vmem:[#allocation2 + $0x8] sm:$0xff]
    %349 = vset.pattern.permute.xlu0 0
    %350 = vperm.xlu0 %349, %v330
    %v351 = vpop.permute.xlu0 %350
    %354 = vset.pattern.permute.xlu0 0
    %355 = vperm.xlu0 %354, %v331
    %v356 = vpop.permute.xlu0 %355
    %v358 = vmul.f32 %v346, %v351
    %v359 = vmul.f32 %v347, %v356
    %v360 = vld [vmem:[#allocation4] sm:$0xff]
    %v361 = vld [vmem:[#allocation4 + $0x8] sm:$0xff]
    %v362 = vadd.f32 %v358, %v360
    %v363 = vadd.f32 %v359, %v361
    %v364 = vld [vmem:[%s6] sm:$0xff]
    %v365 = vld [vmem:[%s6 + $0x8] sm:$0xff]
    %v366 = vld [vmem:[%s6 + $0x10] sm:$0xff]
    %v367 = vld [vmem:[%s6 + $0x18] sm:$0xff]
    %v368 = vld [vmem:[%s7] sm:$0x1]
    %v370 = vperm.slane %v368, 0
    %vm372 = vcmask 261120
    %v374 = vsel %vm372, %v362, 0
    %v377 = vsel %vm372, %v363, 0
    %379 = vmatpush.msra.mxu0 0.0
    %380 = vmatpush.msra.mxu0 0.0
    %381 = vmatpush.msra.mxu0 0.0
    %382 = vmatpush.msra.mxu0 0.0
    %383 = vmatpush.msra.mxu0 0.0
    %384 = vmatpush.msra.mxu0 0.0
    %385 = vmatpush.msra.mxu0 0.0
    %386 = vmatpush.msra.mxu0 0.0
    %387 = vmatpush.msra.mxu0 0.0
    %388 = vmatpush.msra.mxu0 0.0
    %389 = vmatpush.msra.mxu0 0.0
    %390 = vmatpush.msra.mxu0 0.0
    %391 = vmatpush.msra.mxu0 %v367
    %392 = vmatpush.msra.mxu0 %v366
    %393 = vmatpush.msra.mxu0 %v365
    %394 = vmatpush.msra.mxu0 %v364
    %395 = vmatmul.f32.gmra.mxu0 %v374
    %v396 = vpop.f32.mrf.mxu0
    %v397 = vadd.f32 %v370, %v396
    %398 = vmatmul.f32.gmra.mxu0 %v377
    %v399 = vpop.f32.mrf.mxu0
    %v400 = vadd.f32 %v370, %v399
    %401 = vdwg.mxu0
    %v402 = vld [vmem:[%s8] sm:$0xff]
    %v403 = vld [vmem:[%s8 + $0x8] sm:$0xff]
    %v404 = vld [vmem:[%s8 + $0x10] sm:$0xff]
    %v405 = vld [vmem:[%s8 + $0x18] sm:$0xff]
    %v406 = vld [vmem:[#allocation9] sm:$0x1]
    %v408 = vperm.slane %v406, 0
    %410 = vmatpush.msra.mxu0 0.0
    %411 = vmatpush.msra.mxu0 0.0
    %412 = vmatpush.msra.mxu0 0.0
    %413 = vmatpush.msra.mxu0 0.0
    %414 = vmatpush.msra.mxu0 0.0
    %415 = vmatpush.msra.mxu0 0.0
    %416 = vmatpush.msra.mxu0 0.0
    %417 = vmatpush.msra.mxu0 0.0
    %418 = vmatpush.msra.mxu0 0.0
    %419 = vmatpush.msra.mxu0 0.0
    %420 = vmatpush.msra.mxu0 0.0
    %421 = vmatpush.msra.mxu0 0.0
    %422 = vmatpush.msra.mxu0 %v405
    %423 = vmatpush.msra.mxu0 %v404
    %424 = vmatpush.msra.mxu0 %v403
    %425 = vmatpush.msra.mxu0 %v402
    %426 = vmatmul.f32.gmra.mxu0 %v374
    %v427 = vpop.f32.mrf.mxu0
    %v428 = vadd.f32 %v408, %v427
    %429 = vmatmul.f32.gmra.mxu0 %v377
    %v430 = vpop.f32.mrf.mxu0
    %v431 = vadd.f32 %v408, %v430
    %432 = vdwg.mxu0
    %v433 = vld [vmem:[#allocation10] sm:$0xff]
    %v434 = vld [vmem:[#allocation10 + $0x8] sm:$0xff]
    %v435 = vld [vmem:[#allocation10 + $0x10] sm:$0xff]
    %v436 = vld [vmem:[#allocation10 + $0x18] sm:$0xff]
    %v437 = vld [vmem:[#allocation12] sm:$0x1]
    %v439 = vperm.slane %v437, 0
    %441 = vmatpush.msra.mxu0 0.0
    %442 = vmatpush.msra.mxu0 0.0
    %443 = vmatpush.msra.mxu0 0.0
    %444 = vmatpush.msra.mxu0 0.0
    %445 = vmatpush.msra.mxu0 0.0
    %446 = vmatpush.msra.mxu0 0.0
    %447 = vmatpush.msra.mxu0 0.0
    %448 = vmatpush.msra.mxu0 0.0
    %449 = vmatpush.msra.mxu0 0.0
    %450 = vmatpush.msra.mxu0 0.0
    %451 = vmatpush.msra.mxu0 0.0
    %452 = vmatpush.msra.mxu0 0.0
    %453 = vmatpush.msra.mxu0 %v436
    %454 = vmatpush.msra.mxu0 %v435
    %455 = vmatpush.msra.mxu0 %v434
    %456 = vmatpush.msra.mxu0 %v433
    %457 = vmatmul.f32.gmra.mxu0 %v374
    %v458 = vpop.f32.mrf.mxu0
    %v459 = vadd.f32 %v439, %v458
    %460 = vmatmul.f32.gmra.mxu0 %v377
    %v461 = vpop.f32.mrf.mxu0
    %v462 = vadd.f32 %v439, %v461
    %463 = vdwg.mxu0
    %v468 = vperm.slane %v334, 0
    %v469 = vperm.slane %v335, 0
    %v470 = vperm.slane %v336, 0
    %v471 = vperm.slane %v337, 0
    %v476 = vmul.f32 %v428, %v468
    %v477 = vmul.f32 %v431, %v468
    %v478 = vmul.f32 %v428, %v469
    %v479 = vmul.f32 %v431, %v469
    %v480 = vmul.f32 %v428, %v470
    %v481 = vmul.f32 %v431, %v470
    %v482 = vmul.f32 %v428, %v471
    %v483 = vmul.f32 %v431, %v471
    %v484 = vmul.f32 %v459, %v468
    %v485 = vmul.f32 %v462, %v468
    %v486 = vmul.f32 %v459, %v469
    %v487 = vmul.f32 %v462, %v469
    %v488 = vmul.f32 %v459, %v470
    %v489 = vmul.f32 %v462, %v470
    %v490 = vmul.f32 %v459, %v471
    %v491 = vmul.f32 %v462, %v471
    %v493 = vsel %vm372, %v397, 0
    %v496 = vsel %vm372, %v400, 0
    %v499 = vsel %vm372, %v476, 0
    %v502 = vsel %vm372, %v477, 0
    %v505 = vsel %vm372, %v478, 0
    %v508 = vsel %vm372, %v479, 0
    %v511 = vsel %vm372, %v480, 0
    %v514 = vsel %vm372, %v481, 0
    %v517 = vsel %vm372, %v482, 0
    %v520 = vsel %vm372, %v483, 0
    %522 = vmatpush.xpose.msra.mxu0 0.0
    %523 = vmatpush.xpose.msra.mxu0 0.0
    %524 = vmatpush.xpose.msra.mxu0 0.0
    %525 = vmatpush.xpose.msra.mxu0 0.0
    %526 = vmatpush.xpose.msra.mxu0 0.0
    %527 = vmatpush.xpose.msra.mxu0 0.0
    %528 = vmatpush.xpose.msra.mxu0 0.0
    %529 = vmatpush.xpose.msra.mxu0 0.0
    %530 = vmatpush.xpose.msra.mxu0 %v520
    %531 = vmatpush.xpose.msra.mxu0 %v517
    %532 = vmatpush.xpose.msra.mxu0 %v514
    %533 = vmatpush.xpose.msra.mxu0 %v511
    %534 = vmatpush.xpose.msra.mxu0 %v508
    %535 = vmatpush.xpose.msra.mxu0 %v505
    %536 = vmatpush.xpose.msra.mxu0 %v502
    %537 = vmatpush.xpose.msra.mxu0 %v499
    %538 = vmatmul.f32.gmra.mxu0 %v493
    %v539 = vpop.f32.mrf.mxu0
    %v540 = vadd.f32 %v332, %v539
    %541 = vmatmul.f32.gmra.mxu0 %v496
    %v542 = vpop.f32.mrf.mxu0
    %v543 = vadd.f32 %v333, %v542
    %544 = vdwg.mxu0
    %vm545 = vcmask 523264
    %v546 = vsel %vm545, %v540, -inf
    %547 = vmax.xlane.f32.xlu0 %v546
    %v548 = vpop.xlane.xlu0 %547
    %v549 = vsel %vm545, %v543, -inf
    %550 = vmax.xlane.f32.xlu0 %v549
    %v551 = vpop.xlane.xlu0 %550
    %v552 = vsub.f32 %v540, %v548
    %v553 = vsub.f32 %v543, %v551
    %v554 = vmul.f32 %v552, 1.442695
    %v555 = vpow.pop %v554
    %v556 = vmul.f32 %v553, 1.442695
    %v557 = vpow.pop %v556
    %v559 = vsel %vm545, %v555, 0
    %v562 = vsel %vm545, %v557, 0
    %564 = vmatpush.msra.mxu0 0.0
    %565 = vmatpush.msra.mxu0 0.0
    %566 = vmatpush.msra.mxu0 0.0
    %567 = vmatpush.msra.mxu0 0.0
    %568 = vmatpush.msra.mxu0 0.0
    %569 = vmatpush.msra.mxu0 0.0
    %570 = vmatpush.msra.mxu0 0.0
    %571 = vmatpush.msra.mxu0 0.0
    %572 = vmatpush.msra.mxu0 %v345
    %573 = vmatpush.msra.mxu0 %v344
    %574 = vmatpush.msra.mxu0 %v343
    %575 = vmatpush.msra.mxu0 %v342
    %576 = vmatpush.msra.mxu0 %v341
    %577 = vmatpush.msra.mxu0 %v340
    %578 = vmatpush.msra.mxu0 %v339
    %579 = vmatpush.msra.mxu0 %v338
    %580 = vmatmul.f32.gmra.mxu0 %v559
    %v581 = vpop.f32.mrf.mxu0
    %v582 = vadd.f32 0.0, %v581
    %583 = vmatmul.f32.gmra.mxu0 %v562
    %v584 = vpop.f32.mrf.mxu0
    %v585 = vadd.f32 0.0, %v584
    %586 = vdwg.mxu0
    %v587 = vmax.f32 %v582, 1e-20
    %v588 = vmax.f32 %v585, 1e-20
    %v589 = vrcp.pop %v587
    %v590 = vrcp.pop %v588
    %v591 = vmul.f32 %v555, %v589
    %v592 = vmul.f32 %v557, %v590
    %v594 = vsel %vm545, %v591, 0
    %v597 = vsel %vm545, %v592, 0
    %599 = vmatpush.msra.mxu0 0.0
    %600 = vmatpush.msra.mxu0 0.0
    %601 = vmatpush.msra.mxu0 0.0
    %602 = vmatpush.msra.mxu0 0.0
    %603 = vmatpush.msra.mxu0 0.0
    %604 = vmatpush.msra.mxu0 0.0
    %605 = vmatpush.msra.mxu0 0.0
    %606 = vmatpush.msra.mxu0 0.0
    %607 = vmatpush.msra.mxu0 %v491
    %608 = vmatpush.msra.mxu0 %v490
    %609 = vmatpush.msra.mxu0 %v489
    %610 = vmatpush.msra.mxu0 %v488
    %611 = vmatpush.msra.mxu0 %v487
    %612 = vmatpush.msra.mxu0 %v486
    %613 = vmatpush.msra.mxu0 %v485
    %614 = vmatpush.msra.mxu0 %v484
    %615 = vmatmul.f32.gmra.mxu0 %v594
    %v616 = vpop.f32.mrf.mxu0
    %v617 = vadd.f32 0.0, %v616
    %618 = vmatmul.f32.gmra.mxu0 %v597
    %v619 = vpop.f32.mrf.mxu0
    %v620 = vadd.f32 0.0, %v619
    %621 = vdwg.mxu0
    %v622 = vld [vmem:[#allocation13] sm:$0xff]
    %v623 = vld [vmem:[#allocation13 + $0x8] sm:$0xff]
    %v624 = vld [vmem:[#allocation13 + $0x10] sm:$0xff]
    %v625 = vld [vmem:[#allocation13 + $0x18] sm:$0xff]
    %v626 = vld [vmem:[#allocation15] sm:$0x1]
    %v628 = vperm.slane %v626, 0
    %v631 = vsel %vm372, %v617, 0
    %v634 = vsel %vm372, %v620, 0
    %636 = vmatpush.msra.mxu0 0.0
    %637 = vmatpush.msra.mxu0 0.0
    %638 = vmatpush.msra.mxu0 0.0
    %639 = vmatpush.msra.mxu0 0.0
    %640 = vmatpush.msra.mxu0 0.0
    %641 = vmatpush.msra.mxu0 0.0
    %642 = vmatpush.msra.mxu0 0.0
    %643 = vmatpush.msra.mxu0 0.0
    %644 = vmatpush.msra.mxu0 0.0
    %645 = vmatpush.msra.mxu0 0.0
    %646 = vmatpush.msra.mxu0 0.0
    %647 = vmatpush.msra.mxu0 0.0
    %648 = vmatpush.msra.mxu0 %v625
    %649 = vmatpush.msra.mxu0 %v624
    %650 = vmatpush.msra.mxu0 %v623
    %651 = vmatpush.msra.mxu0 %v622
    %652 = vmatmul.f32.gmra.mxu0 %v631
    %v653 = vpop.f32.mrf.mxu0
    %v654 = vadd.f32 %v628, %v653
    %655 = vmatmul.f32.gmra.mxu0 %v634
    %v656 = vpop.f32.mrf.mxu0
    %v657 = vadd.f32 %v628, %v656
    %658 = vdwg.mxu0
    %v659 = vadd.f32 %v654, %v362
    %v660 = vadd.f32 %v657, %v363
    %v661 = vld [vmem:[#allocation24] sm:$0x1]
    %v662 = vld [vmem:[%s21] sm:$0x1]
    %v663 = vsel %vm372, %v659, 0.0
    %664 = vadd.xlane.f32.xlu0 %v663
    %v665 = vpop.xlane.xlu0 %664
    %v666 = vsel %vm372, %v660, 0.0
    %667 = vadd.xlane.f32.xlu0 %v666
    %v668 = vpop.xlane.xlu0 %667
    %v669 = vrcp.pop 32.0
    %v670 = vmul.f32 32.0, %v669
    %v671 = vsub.f32 1.0, %v670
    %v672 = vmul.f32 %v669, %v671
    %v673 = vadd.f32 %v669, %v672
    %vm674 = vweird.f32 %v669
    %v675 = vsel %vm674, %v669, %v673
    %v676 = vmul.f32 %v665, %v675
    %v677 = vmul.f32 %v668, %v675
    %v678 = vsub.f32 %v659, %v676
    %v679 = vsub.f32 %v660, %v677
    %v680 = vmul.f32 %v678, %v678
    %v681 = vmul.f32 %v679, %v679
    %v682 = vsel %vm372, %v680, 0.0
    %683 = vadd.xlane.f32.xlu0 %v682
    %v684 = vpop.xlane.xlu0 %683
    %v685 = vsel %vm372, %v681, 0.0
    %686 = vadd.xlane.f32.xlu0 %v685
    %v687 = vpop.xlane.xlu0 %686
    %v688 = vmul.f32 %v684, %v675
    %v689 = vmul.f32 %v687, %v675
    %v690 = vadd.f32 %v688, 1e-06
    %v691 = vadd.f32 %v689, 1e-06
    %v692 = vrsqrt.pop %v690
    %v693 = vmul.f32 %v692, %v690
    %v694 = vmul.f32 %v693, %v692
    %v695 = vmul.f32 0.5, %v694
    %v696 = vsub.f32 1.5, %v695
    %v697 = vmul.f32 %v692, %v696
    %vm698 = vweird.f32 %v690
    %vm699 = vweird.f32 %v692
    %vm700 = vmor %vm698, %vm699
    %v701 = vsel %vm700, %v692, %v697
    %v702 = vrsqrt.pop %v691
    %v703 = vmul.f32 %v702, %v691
    %v704 = vmul.f32 %v703, %v702
    %v705 = vmul.f32 0.5, %v704
    %v706 = vsub.f32 1.5, %v705
    %v707 = vmul.f32 %v702, %v706
    %vm708 = vweird.f32 %v691
    %vm709 = vweird.f32 %v702
    %vm710 = vmor %vm708, %vm709
    %v711 = vsel %vm710, %v702, %v707
    %v712 = vmul.f32 %v678, %v701
    %v713 = vmul.f32 %v679, %v711
    %v715 = vperm.slane %v661, 0
    %v717 = vmul.f32 %v712, %v715
    %v718 = vmul.f32 %v713, %v715
    %v720 = vperm.slane %v662, 0
    %v722 = vadd.f32 %v717, %v720
    %v723 = vadd.f32 %v718, %v720
    %v724 = vld [vmem:[#allocation19] sm:$0xff]
    %v725 = vld [vmem:[#allocation19 + $0x8] sm:$0xff]
    %v726 = vld [vmem:[#allocation19 + $0x10] sm:$0xff]
    %v727 = vld [vmem:[#allocation19 + $0x18] sm:$0xff]
    %v728 = vld [vmem:[#allocation21] sm:$0x1]
    %v730 = vperm.slane %v728, 0
    %v733 = vsel %vm372, %v722, 0
    %v736 = vsel %vm372, %v723, 0
    %738 = vmatpush.msra.mxu0 0.0
    %739 = vmatpush.msra.mxu0 0.0
    %740 = vmatpush.msra.mxu0 0.0
    %741 = vmatpush.msra.mxu0 0.0
    %742 = vmatpush.msra.mxu0 0.0
    %743 = vmatpush.msra.mxu0 0.0
    %744 = vmatpush.msra.mxu0 0.0
    %745 = vmatpush.msra.mxu0 0.0
    %746 = vmatpush.msra.mxu0 0.0
    %747 = vmatpush.msra.mxu0 0.0
    %748 = vmatpush.msra.mxu0 0.0
    %749 = vmatpush.msra.mxu0 0.0
    %750 = vmatpush.msra.mxu0 %v727
    %751 = vmatpush.msra.mxu0 %v726
    %752 = vmatpush.msra.mxu0 %v725
    %753 = vmatpush.msra.mxu0 %v724
    %754 = vmatmul.f32.gmra.mxu0 %v733
    %v755 = vpop.f32.mrf.mxu0
    %v756 = vadd.f32 %v730, %v755
    %757 = vmatmul.f32.gmra.mxu0 %v736
    %v758 = vpop.f32.mrf.mxu0
    %v759 = vadd.f32 %v730, %v758
    %760 = vdwg.mxu0
    %v761 = vmul.f32 %v756, 0.5
    %v762 = vmul.f32 %v759, 0.5
    %v763 = vmul.f32 %v756, 0.044715
    %v764 = vmul.f32 %v759, 0.044715
    %v765 = vmul.f32 %v763, %v756
    %v766 = vmul.f32 %v764, %v759
    %v767 = vmul.f32 %v765, %v756
    %v768 = vmul.f32 %v766, %v759
    %v769 = vadd.f32 %v756, %v767
    %v770 = vadd.f32 %v759, %v768
    %v771 = vmul.f32 %v769, 0.7978846
    %v772 = vmul.f32 %v770, 0.7978846
    %v773 = vtanh.pop %v771
    %v774 = vtanh.pop %v772
    %v775 = vadd.f32 %v773, 1.0
    %v776 = vadd.f32 %v774, 1.0
    %v777 = vmul.f32 %v761, %v775
    %v778 = vmul.f32 %v762, %v776
    %v779 = vld [vmem:[%s18] sm:$0xff]
    %v780 = vld [vmem:[%s18 + $0x8] sm:$0xff]
    %v781 = vld [vmem:[%s18 + $0x10] sm:$0xff]
    %v782 = vld [vmem:[%s18 + $0x18] sm:$0xff]
    %v783 = vld [vmem:[%s18 + $0x20] sm:$0xff]
    %v784 = vld [vmem:[%s18 + $0x28] sm:$0xff]
    %v785 = vld [vmem:[%s18 + $0x30] sm:$0xff]
    %v786 = vld [vmem:[%s18 + $0x38] sm:$0xff]
    %v787 = vld [vmem:[#allocation22] sm:$0x1]
    %v789 = vperm.slane %v787, 0
    %v792 = vsel %vm545, %v777, 0
    %v795 = vsel %vm545, %v778, 0
    %797 = vmatpush.msra.mxu0 0.0
    %798 = vmatpush.msra.mxu0 0.0
    %799 = vmatpush.msra.mxu0 0.0
    %800 = vmatpush.msra.mxu0 0.0
    %801 = vmatpush.msra.mxu0 0.0
    %802 = vmatpush.msra.mxu0 0.0
    %803 = vmatpush.msra.mxu0 0.0
    %804 = vmatpush.msra.mxu0 0.0
    %805 = vmatpush.msra.mxu0 %v786
    %806 = vmatpush.msra.mxu0 %v785
    %807 = vmatpush.msra.mxu0 %v784
    %808 = vmatpush.msra.mxu0 %v783
    %809 = vmatpush.msra.mxu0 %v782
    %810 = vmatpush.msra.mxu0 %v781
    %811 = vmatpush.msra.mxu0 %v780
    %812 = vmatpush.msra.mxu0 %v779
    %813 = vmatmul.f32.gmra.mxu0 %v792
    %v814 = vpop.f32.mrf.mxu0
    %v815 = vadd.f32 %v789, %v814
    %816 = vmatmul.f32.gmra.mxu0 %v795
    %v817 = vpop.f32.mrf.mxu0
    %v818 = vadd.f32 %v789, %v817
    %819 = vdwg.mxu0
    %v820 = vadd.f32 %v815, %v659
    %v821 = vadd.f32 %v818, %v660
    %s822 = scalar_lea.vmem [#allocation16], 1
    %v823 = vld [vmem:[%s822] sm:$0x1]
    %s824 = scalar_lea.vmem [#allocation18], 1
    %v825 = vld [vmem:[%s824] sm:$0x1]
    %v826 = vsel %vm372, %v820, 0.0
    %827 = vadd.xlane.f32.xlu0 %v826
    %v828 = vpop.xlane.xlu0 %827
    %v829 = vsel %vm372, %v821, 0.0
    %830 = vadd.xlane.f32.xlu0 %v829
    %v831 = vpop.xlane.xlu0 %830
    %v832 = vmul.f32 %v828, %v675
    %v833 = vmul.f32 %v831, %v675
    %v834 = vsub.f32 %v820, %v832
    %v835 = vsub.f32 %v821, %v833
    %v836 = vmul.f32 %v834, %v834
    %v837 = vmul.f32 %v835, %v835
    %v838 = vsel %vm372, %v836, 0.0
    %839 = vadd.xlane.f32.xlu0 %v838
    %v840 = vpop.xlane.xlu0 %839
    %v841 = vsel %vm372, %v837, 0.0
    %842 = vadd.xlane.f32.xlu0 %v841
    %v843 = vpop.xlane.xlu0 %842
    %v844 = vmul.f32 %v840, %v675
    %v845 = vmul.f32 %v843, %v675
    %v846 = vadd.f32 %v844, 1e-06
    %v847 = vadd.f32 %v845, 1e-06
    %v848 = vrsqrt.pop %v846
    %v849 = vmul.f32 %v848, %v846
    %v850 = vmul.f32 %v849, %v848
    %v851 = vmul.f32 0.5, %v850
    %v852 = vsub.f32 1.5, %v851
    %v853 = vmul.f32 %v848, %v852
    %vm854 = vweird.f32 %v846
    %vm855 = vweird.f32 %v848
    %vm856 = vmor %vm854, %vm855
    %v857 = vsel %vm856, %v848, %v853
    %v858 = vrsqrt.pop %v847
    %v859 = vmul.f32 %v858, %v847
    %v860 = vmul.f32 %v859, %v858
    %v861 = vmul.f32 0.5, %v860
    %v862 = vsub.f32 1.5, %v861
    %v863 = vmul.f32 %v858, %v862
    %vm864 = vweird.f32 %v847
    %vm865 = vweird.f32 %v858
    %vm866 = vmor %vm864, %vm865
    %v867 = vsel %vm866, %v858, %v863
    %v868 = vmul.f32 %v834, %v857
    %v869 = vmul.f32 %v835, %v867
    %v871 = vperm.slane %v823, 0
    %v873 = vmul.f32 %v868, %v871
    %v874 = vmul.f32 %v869, %v871
    %v876 = vperm.slane %v825, 0
    %v878 = vadd.f32 %v873, %v876
    %v879 = vadd.f32 %v874, %v876
    %s880 = scalar_lea.vmem %s6, 32
    %v881 = vld [vmem:[%s880] sm:$0xff]
    %v882 = vld [vmem:[%s880 + $0x8] sm:$0xff]
    %v883 = vld [vmem:[%s880 + $0x10] sm:$0xff]
    %v884 = vld [vmem:[%s880 + $0x18] sm:$0xff]
    %s885 = scalar_lea.vmem %s7, 1
    %v886 = vld [vmem:[%s885] sm:$0x1]
    %v888 = vperm.slane %v886, 0
    %v891 = vsel %vm372, %v878, 0
    %v894 = vsel %vm372, %v879, 0
    %896 = vmatpush.msra.mxu0 0.0
    %897 = vmatpush.msra.mxu0 0.0
    %898 = vmatpush.msra.mxu0 0.0
    %899 = vmatpush.msra.mxu0 0.0
    %900 = vmatpush.msra.mxu0 0.0
    %901 = vmatpush.msra.mxu0 0.0
    %902 = vmatpush.msra.mxu0 0.0
    %903 = vmatpush.msra.mxu0 0.0
    %904 = vmatpush.msra.mxu0 0.0
    %905 = vmatpush.msra.mxu0 0.0
    %906 = vmatpush.msra.mxu0 0.0
    %907 = vmatpush.msra.mxu0 0.0
    %908 = vmatpush.msra.mxu0 %v884
    %909 = vmatpush.msra.mxu0 %v883
    %910 = vmatpush.msra.mxu0 %v882
    %911 = vmatpush.msra.mxu0 %v881
    %912 = vmatmul.f32.gmra.mxu0 %v891
    %v913 = vpop.f32.mrf.mxu0
    %v914 = vadd.f32 %v888, %v913
    %915 = vmatmul.f32.gmra.mxu0 %v894
    %v916 = vpop.f32.mrf.mxu0
    %v917 = vadd.f32 %v888, %v916
    %918 = vdwg.mxu0
    %s919 = scalar_lea.vmem %s8, 32
    %v920 = vld [vmem:[%s919] sm:$0xff]
    %v921 = vld [vmem:[%s919 + $0x8] sm:$0xff]
    %v922 = vld [vmem:[%s919 + $0x10] sm:$0xff]
    %v923 = vld [vmem:[%s919 + $0x18] sm:$0xff]
    %s924 = scalar_lea.vmem [#allocation9], 1
    %v925 = vld [vmem:[%s924] sm:$0x1]
    %v927 = vperm.slane %v925, 0
    %929 = vmatpush.msra.mxu0 0.0
    %930 = vmatpush.msra.mxu0 0.0
    %931 = vmatpush.msra.mxu0 0.0
    %932 = vmatpush.msra.mxu0 0.0
    %933 = vmatpush.msra.mxu0 0.0
    %934 = vmatpush.msra.mxu0 0.0
    %935 = vmatpush.msra.mxu0 0.0
    %936 = vmatpush.msra.mxu0 0.0
    %937 = vmatpush.msra.mxu0 0.0
    %938 = vmatpush.msra.mxu0 0.0
    %939 = vmatpush.msra.mxu0 0.0
    %940 = vmatpush.msra.mxu0 0.0
    %941 = vmatpush.msra.mxu0 %v923
    %942 = vmatpush.msra.mxu0 %v922
    %943 = vmatpush.msra.mxu0 %v921
    %944 = vmatpush.msra.mxu0 %v920
    %945 = vmatmul.f32.gmra.mxu0 %v891
    %v946 = vpop.f32.mrf.mxu0
    %v947 = vadd.f32 %v927, %v946
    %948 = vmatmul.f32.gmra.mxu0 %v894
    %v949 = vpop.f32.mrf.mxu0
    %v950 = vadd.f32 %v927, %v949
    %951 = vdwg.mxu0
    %s952 = scalar_lea.vmem [#allocation10], 32
    %v953 = vld [vmem:[%s952] sm:$0xff]
    %v954 = vld [vmem:[%s952 + $0x8] sm:$0xff]
    %v955 = vld [vmem:[%s952 + $0x10] sm:$0xff]
    %v956 = vld [vmem:[%s952 + $0x18] sm:$0xff]
    %s957 = scalar_lea.vmem [#allocation12], 1
    %v958 = vld [vmem:[%s957] sm:$0x1]
    %v960 = vperm.slane %v958, 0
    %962 = vmatpush.msra.mxu0 0.0
    %963 = vmatpush.msra.mxu0 0.0
    %964 = vmatpush.msra.mxu0 0.0
    %965 = vmatpush.msra.mxu0 0.0
    %966 = vmatpush.msra.mxu0 0.0
    %967 = vmatpush.msra.mxu0 0.0
    %968 = vmatpush.msra.mxu0 0.0
    %969 = vmatpush.msra.mxu0 0.0
    %970 = vmatpush.msra.mxu0 0.0
    %971 = vmatpush.msra.mxu0 0.0
    %972 = vmatpush.msra.mxu0 0.0
    %973 = vmatpush.msra.mxu0 0.0
    %974 = vmatpush.msra.mxu0 %v956
    %975 = vmatpush.msra.mxu0 %v955
    %976 = vmatpush.msra.mxu0 %v954
    %977 = vmatpush.msra.mxu0 %v953
    %978 = vmatmul.f32.gmra.mxu0 %v891
    %v979 = vpop.f32.mrf.mxu0
    %v980 = vadd.f32 %v960, %v979
    %981 = vmatmul.f32.gmra.mxu0 %v894
    %v982 = vpop.f32.mrf.mxu0
    %v983 = vadd.f32 %v960, %v982
    %984 = vdwg.mxu0
    %v985 = vmul.f32 %v947, %v468
    %v986 = vmul.f32 %v950, %v468
    %v987 = vmul.f32 %v947, %v469
    %v988 = vmul.f32 %v950, %v469
    %v989 = vmul.f32 %v947, %v470
    %v990 = vmul.f32 %v950, %v470
    %v991 = vmul.f32 %v947, %v471
    %v992 = vmul.f32 %v950, %v471
    %v993 = vmul.f32 %v980, %v468
    %v994 = vmul.f32 %v983, %v468
    %v995 = vmul.f32 %v980, %v469
    %v996 = vmul.f32 %v983, %v469
    %v997 = vmul.f32 %v980, %v470
    %v998 = vmul.f32 %v983, %v470
    %v999 = vmul.f32 %v980, %v471
    %v1000 = vmul.f32 %v983, %v471
    %v1002 = vsel %vm372, %v914, 0
    %v1005 = vsel %vm372, %v917, 0
    %v1008 = vsel %vm372, %v985, 0
    %v1011 = vsel %vm372, %v986, 0
    %v1014 = vsel %vm372, %v987, 0
    %v1017 = vsel %vm372, %v988, 0
    %v1020 = vsel %vm372, %v989, 0
    %v1023 = vsel %vm372, %v990, 0
    %v1026 = vsel %vm372, %v991, 0
    %v1029 = vsel %vm372, %v992, 0
    %1031 = vmatpush.xpose.msra.mxu0 0.0
    %1032 = vmatpush.xpose.msra.mxu0 0.0
    %1033 = vmatpush.xpose.msra.mxu0 0.0
    %1034 = vmatpush.xpose.msra.mxu0 0.0
    %1035 = vmatpush.xpose.msra.mxu0 0.0
    %1036 = vmatpush.xpose.msra.mxu0 0.0
    %1037 = vmatpush.xpose.msra.mxu0 0.0
    %1038 = vmatpush.xpose.msra.mxu0 0.0
    %1039 = vmatpush.xpose.msra.mxu0 %v1029
    %1040 = vmatpush.xpose.msra.mxu0 %v1026
    %1041 = vmatpush.xpose.msra.mxu0 %v1023
    %1042 = vmatpush.xpose.msra.mxu0 %v1020
    %1043 = vmatpush.xpose.msra.mxu0 %v1017
    %1044 = vmatpush.xpose.msra.mxu0 %v1014
    %1045 = vmatpush.xpose.msra.mxu0 %v1011
    %1046 = vmatpush.xpose.msra.mxu0 %v1008
    %1047 = vmatmul.f32.gmra.mxu0 %v1002
    %v1048 = vpop.f32.mrf.mxu0
    %v1049 = vadd.f32 %v332, %v1048
    %1050 = vmatmul.f32.gmra.mxu0 %v1005
    %v1051 = vpop.f32.mrf.mxu0
    %v1052 = vadd.f32 %v333, %v1051
    %1053 = vdwg.mxu0
    %v1054 = vsel %vm545, %v1049, -inf
    %1055 = vmax.xlane.f32.xlu0 %v1054
    %v1056 = vpop.xlane.xlu0 %1055
    %v1057 = vsel %vm545, %v1052, -inf
    %1058 = vmax.xlane.f32.xlu0 %v1057
    %v1059 = vpop.xlane.xlu0 %1058
    %v1060 = vsub.f32 %v1049, %v1056
    %v1061 = vsub.f32 %v1052, %v1059
    %v1062 = vmul.f32 %v1060, 1.442695
    %v1063 = vpow.pop %v1062
    %v1064 = vmul.f32 %v1061, 1.442695
    %v1065 = vpow.pop %v1064
    %v1067 = vsel %vm545, %v1063, 0
    %v1070 = vsel %vm545, %v1065, 0
    %1072 = vmatpush.msra.mxu0 0.0
    %1073 = vmatpush.msra.mxu0 0.0
    %1074 = vmatpush.msra.mxu0 0.0
    %1075 = vmatpush.msra.mxu0 0.0
    %1076 = vmatpush.msra.mxu0 0.0
    %1077 = vmatpush.msra.mxu0 0.0
    %1078 = vmatpush.msra.mxu0 0.0
    %1079 = vmatpush.msra.mxu0 0.0
    %1080 = vmatpush.msra.mxu0 %v345
    %1081 = vmatpush.msra.mxu0 %v344
    %1082 = vmatpush.msra.mxu0 %v343
    %1083 = vmatpush.msra.mxu0 %v342
    %1084 = vmatpush.msra.mxu0 %v341
    %1085 = vmatpush.msra.mxu0 %v340
    %1086 = vmatpush.msra.mxu0 %v339
    %1087 = vmatpush.msra.mxu0 %v338
    %1088 = vmatmul.f32.gmra.mxu0 %v1067
    %v1089 = vpop.f32.mrf.mxu0
    %v1090 = vadd.f32 0.0, %v1089
    %1091 = vmatmul.f32.gmra.mxu0 %v1070
    %v1092 = vpop.f32.mrf.mxu0
    %v1093 = vadd.f32 0.0, %v1092
    %1094 = vdwg.mxu0
    %v1095 = vmax.f32 %v1090, 1e-20
    %v1096 = vmax.f32 %v1093, 1e-20
    %v1097 = vrcp.pop %v1095
    %v1098 = vrcp.pop %v1096
    %v1099 = vmul.f32 %v1063, %v1097
    %v1100 = vmul.f32 %v1065, %v1098
    %v1102 = vsel %vm545, %v1099, 0
    %v1105 = vsel %vm545, %v1100, 0
    %1107 = vmatpush.msra.mxu0 0.0
    %1108 = vmatpush.msra.mxu0 0.0
    %1109 = vmatpush.msra.mxu0 0.0
    %1110 = vmatpush.msra.mxu0 0.0
    %1111 = vmatpush.msra.mxu0 0.0
    %1112 = vmatpush.msra.mxu0 0.0
    %1113 = vmatpush.msra.mxu0 0.0
    %1114 = vmatpush.msra.mxu0 0.0
    %1115 = vmatpush.msra.mxu0 %v1000
    %1116 = vmatpush.msra.mxu0 %v999
    %1117 = vmatpush.msra.mxu0 %v998
    %1118 = vmatpush.msra.mxu0 %v997
    %1119 = vmatpush.msra.mxu0 %v996
    %1120 = vmatpush.msra.mxu0 %v995
    %1121 = vmatpush.msra.mxu0 %v994
    %1122 = vmatpush.msra.mxu0 %v993
    %1123 = vmatmul.f32.gmra.mxu0 %v1102
    %v1124 = vpop.f32.mrf.mxu0
    %v1125 = vadd.f32 0.0, %v1124
    %1126 = vmatmul.f32.gmra.mxu0 %v1105
    %v1127 = vpop.f32.mrf.mxu0
    %v1128 = vadd.f32 0.0, %v1127
    %1129 = vdwg.mxu0
    %s1130 = scalar_lea.vmem [#allocation13], 32
    %v1131 = vld [vmem:[%s1130] sm:$0xff]
    %v1132 = vld [vmem:[%s1130 + $0x8] sm:$0xff]
    %v1133 = vld [vmem:[%s1130 + $0x10] sm:$0xff]
    %v1134 = vld [vmem:[%s1130 + $0x18] sm:$0xff]
    %s1135 = scalar_lea.vmem [#allocation15], 1
    %v1136 = vld [vmem:[%s1135] sm:$0x1]
    %v1138 = vperm.slane %v1136, 0
    %v1141 = vsel %vm372, %v1125, 0
    %v1144 = vsel %vm372, %v1128, 0
    %1146 = vmatpush.msra.mxu0 0.0
    %1147 = vmatpush.msra.mxu0 0.0
    %1148 = vmatpush.msra.mxu0 0.0
    %1149 = vmatpush.msra.mxu0 0.0
    %1150 = vmatpush.msra.mxu0 0.0
    %1151 = vmatpush.msra.mxu0 0.0
    %1152 = vmatpush.msra.mxu0 0.0
    %1153 = vmatpush.msra.mxu0 0.0
    %1154 = vmatpush.msra.mxu0 0.0
    %1155 = vmatpush.msra.mxu0 0.0
    %1156 = vmatpush.msra.mxu0 0.0
    %1157 = vmatpush.msra.mxu0 0.0
    %1158 = vmatpush.msra.mxu0 %v1134
    %1159 = vmatpush.msra.mxu0 %v1133
    %1160 = vmatpush.msra.mxu0 %v1132
    %1161 = vmatpush.msra.mxu0 %v1131
    %1162 = vmatmul.f32.gmra.mxu0 %v1141
    %v1163 = vpop.f32.mrf.mxu0
    %v1164 = vadd.f32 %v1138, %v1163
    %1165 = vmatmul.f32.gmra.mxu0 %v1144
    %v1166 = vpop.f32.mrf.mxu0
    %v1167 = vadd.f32 %v1138, %v1166
    %1168 = vdwg.mxu0
    %v1169 = vadd.f32 %v1164, %v820
    %v1170 = vadd.f32 %v1167, %v821
    %s1171 = scalar_lea.vmem [#allocation24], 1
    %v1172 = vld [vmem:[%s1171] sm:$0x1]
    %s1173 = scalar_lea.vmem %s21, 1
    %v1174 = vld [vmem:[%s1173] sm:$0x1]
    %v1175 = vsel %vm372, %v1169, 0.0
    %1176 = vadd.xlane.f32.xlu0 %v1175
    %v1177 = vpop.xlane.xlu0 %1176
    %v1178 = vsel %vm372, %v1170, 0.0
    %1179 = vadd.xlane.f32.xlu0 %v1178
    %v1180 = vpop.xlane.xlu0 %1179
    %v1181 = vmul.f32 %v1177, %v675
    %v1182 = vmul.f32 %v1180, %v675
    %v1183 = vsub.f32 %v1169, %v1181
    %v1184 = vsub.f32 %v1170, %v1182
    %v1185 = vmul.f32 %v1183, %v1183
    %v1186 = vmul.f32 %v1184, %v1184
    %v1187 = vsel %vm372, %v1185, 0.0
    %1188 = vadd.xlane.f32.xlu0 %v1187
    %v1189 = vpop.xlane.xlu0 %1188
    %v1190 = vsel %vm372, %v1186, 0.0
    %1191 = vadd.xlane.f32.xlu0 %v1190
    %v1192 = vpop.xlane.xlu0 %1191
    %v1193 = vmul.f32 %v1189, %v675
    %v1194 = vmul.f32 %v1192, %v675
    %v1195 = vadd.f32 %v1193, 1e-06
    %v1196 = vadd.f32 %v1194, 1e-06
    %v1197 = vrsqrt.pop %v1195
    %v1198 = vmul.f32 %v1197, %v1195
    %v1199 = vmul.f32 %v1198, %v1197
    %v1200 = vmul.f32 0.5, %v1199
    %v1201 = vsub.f32 1.5, %v1200
    %v1202 = vmul.f32 %v1197, %v1201
    %vm1203 = vweird.f32 %v1195
    %vm1204 = vweird.f32 %v1197
    %vm1205 = vmor %vm1203, %vm1204
    %v1206 = vsel %vm1205, %v1197, %v1202
    %v1207 = vrsqrt.pop %v1196
    %v1208 = vmul.f32 %v1207, %v1196
    %v1209 = vmul.f32 %v1208, %v1207
    %v1210 = vmul.f32 0.5, %v1209
    %v1211 = vsub.f32 1.5, %v1210
    %v1212 = vmul.f32 %v1207, %v1211
    %vm1213 = vweird.f32 %v1196
    %vm1214 = vweird.f32 %v1207
    %vm1215 = vmor %vm1213, %vm1214
    %v1216 = vsel %vm1215, %v1207, %v1212
    %v1217 = vmul.f32 %v1183, %v1206
    %v1218 = vmul.f32 %v1184, %v1216
    %v1220 = vperm.slane %v1172, 0
    %v1222 = vmul.f32 %v1217, %v1220
    %v1223 = vmul.f32 %v1218, %v1220
    %v1225 = vperm.slane %v1174, 0
    %v1227 = vadd.f32 %v1222, %v1225
    %v1228 = vadd.f32 %v1223, %v1225
    %s1229 = scalar_lea.vmem [#allocation19], 32
    %v1230 = vld [vmem:[%s1229] sm:$0xff]
    %v1231 = vld [vmem:[%s1229 + $0x8] sm:$0xff]
    %v1232 = vld [vmem:[%s1229 + $0x10] sm:$0xff]
    %v1233 = vld [vmem:[%s1229 + $0x18] sm:$0xff]
    %s1234 = scalar_lea.vmem [#allocation21], 1
    %v1235 = vld [vmem:[%s1234] sm:$0x1]
    %v1237 = vperm.slane %v1235, 0
    %v1240 = vsel %vm372, %v1227, 0
    %v1243 = vsel %vm372, %v1228, 0
    %1245 = vmatpush.msra.mxu0 0.0
    %1246 = vmatpush.msra.mxu0 0.0
    %1247 = vmatpush.msra.mxu0 0.0
    %1248 = vmatpush.msra.mxu0 0.0
    %1249 = vmatpush.msra.mxu0 0.0
    %1250 = vmatpush.msra.mxu0 0.0
    %1251 = vmatpush.msra.mxu0 0.0
    %1252 = vmatpush.msra.mxu0 0.0
    %1253 = vmatpush.msra.mxu0 0.0
    %1254 = vmatpush.msra.mxu0 0.0
    %1255 = vmatpush.msra.mxu0 0.0
    %1256 = vmatpush.msra.mxu0 0.0
    %1257 = vmatpush.msra.mxu0 %v1233
    %1258 = vmatpush.msra.mxu0 %v1232
    %1259 = vmatpush.msra.mxu0 %v1231
    %1260 = vmatpush.msra.mxu0 %v1230
    %1261 = vmatmul.f32.gmra.mxu0 %v1240
    %v1262 = vpop.f32.mrf.mxu0
    %v1263 = vadd.f32 %v1237, %v1262
    %1264 = vmatmul.f32.gmra.mxu0 %v1243
    %v1265 = vpop.f32.mrf.mxu0
    %v1266 = vadd.f32 %v1237, %v1265
    %1267 = vdwg.mxu0
    %v1268 = vmul.f32 %v1263, 0.5
    %v1269 = vmul.f32 %v1266, 0.5
    %v1270 = vmul.f32 %v1263, 0.044715
    %v1271 = vmul.f32 %v1266, 0.044715
    %v1272 = vmul.f32 %v1270, %v1263
    %v1273 = vmul.f32 %v1271, %v1266
    %v1274 = vmul.f32 %v1272, %v1263
    %v1275 = vmul.f32 %v1273, %v1266
    %v1276 = vadd.f32 %v1263, %v1274
    %v1277 = vadd.f32 %v1266, %v1275
    %v1278 = vmul.f32 %v1276, 0.7978846
    %v1279 = vmul.f32 %v1277, 0.7978846
    %v1280 = vtanh.pop %v1278
    %v1281 = vtanh.pop %v1279
    %v1282 = vadd.f32 %v1280, 1.0
    %v1283 = vadd.f32 %v1281, 1.0
    %v1284 = vmul.f32 %v1268, %v1282
    %v1285 = vmul.f32 %v1269, %v1283
    %s1286 = scalar_lea.vmem %s18, 64
    %v1287 = vld [vmem:[%s1286] sm:$0xff]
    %v1288 = vld [vmem:[%s1286 + $0x8] sm:$0xff]
    %v1289 = vld [vmem:[%s1286 + $0x10] sm:$0xff]
    %v1290 = vld [vmem:[%s1286 + $0x18] sm:$0xff]
    %v1291 = vld [vmem:[%s1286 + $0x20] sm:$0xff]
    %v1292 = vld [vmem:[%s1286 + $0x28] sm:$0xff]
    %v1293 = vld [vmem:[%s1286 + $0x30] sm:$0xff]
    %v1294 = vld [vmem:[%s1286 + $0x38] sm:$0xff]
    %s1295 = scalar_lea.vmem [#allocation22], 1
    %v1296 = vld [vmem:[%s1295] sm:$0x1]
    %v1298 = vperm.slane %v1296, 0
    %v1301 = vsel %vm545, %v1284, 0
    %v1304 = vsel %vm545, %v1285, 0
    %1306 = vmatpush.msra.mxu0 0.0
    %1307 = vmatpush.msra.mxu0 0.0
    %1308 = vmatpush.msra.mxu0 0.0
    %1309 = vmatpush.msra.mxu0 0.0
    %1310 = vmatpush.msra.mxu0 0.0
    %1311 = vmatpush.msra.mxu0 0.0
    %1312 = vmatpush.msra.mxu0 0.0
    %1313 = vmatpush.msra.mxu0 0.0
    %1314 = vmatpush.msra.mxu0 %v1294
    %1315 = vmatpush.msra.mxu0 %v1293
    %1316 = vmatpush.msra.mxu0 %v1292
    %1317 = vmatpush.msra.mxu0 %v1291
    %1318 = vmatpush.msra.mxu0 %v1290
    %1319 = vmatpush.msra.mxu0 %v1289
    %1320 = vmatpush.msra.mxu0 %v1288
    %1321 = vmatpush.msra.mxu0 %v1287
    %1322 = vmatmul.f32.gmra.mxu0 %v1301
    %v1323 = vpop.f32.mrf.mxu0
    %v1324 = vadd.f32 %v1298, %v1323
    %1325 = vmatmul.f32.gmra.mxu0 %v1304
    %v1326 = vpop.f32.mrf.mxu0
    %v1327 = vadd.f32 %v1298, %v1326
    %1328 = vdwg.mxu0
    %v1329 = vadd.f32 %v1324, %v1169
    %v1330 = vadd.f32 %v1327, %v1170
    %v1331 = vld [vmem:[%s22] sm:$0x1]
    %v1332 = vld [vmem:[#allocation25] sm:$0x1]
    %v1333 = vsel %vm372, %v1329, 0.0
    %1334 = vadd.xlane.f32.xlu0 %v1333
    %v1335 = vpop.xlane.xlu0 %1334
    %v1336 = vsel %vm372, %v1330, 0.0
    %1337 = vadd.xlane.f32.xlu0 %v1336
    %v1338 = vpop.xlane.xlu0 %1337
    %v1339 = vmul.f32 %v1335, %v675
    %v1340 = vmul.f32 %v1338, %v675
    %v1341 = vsub.f32 %v1329, %v1339
    %v1342 = vsub.f32 %v1330, %v1340
    %v1343 = vmul.f32 %v1341, %v1341
    %v1344 = vmul.f32 %v1342, %v1342
    %v1345 = vsel %vm372, %v1343, 0.0
    %1346 = vadd.xlane.f32.xlu0 %v1345
    %v1347 = vpop.xlane.xlu0 %1346
    %v1348 = vsel %vm372, %v1344, 0.0
    %1349 = vadd.xlane.f32.xlu0 %v1348
    %v1350 = vpop.xlane.xlu0 %1349
    %v1351 = vmul.f32 %v1347, %v675
    %v1352 = vmul.f32 %v1350, %v675
    %v1353 = vadd.f32 %v1351, 1e-06
    %v1354 = vadd.f32 %v1352, 1e-06
    %v1355 = vrsqrt.pop %v1353
    %v1356 = vmul.f32 %v1355, %v1353
    %v1357 = vmul.f32 %v1356, %v1355
    %v1358 = vmul.f32 0.5, %v1357
    %v1359 = vsub.f32 1.5, %v1358
    %v1360 = vmul.f32 %v1355, %v1359
    %vm1361 = vweird.f32 %v1353
    %vm1362 = vweird.f32 %v1355
    %vm1363 = vmor %vm1361, %vm1362
    %v1364 = vsel %vm1363, %v1355, %v1360
    %v1365 = vrsqrt.pop %v1354
    %v1366 = vmul.f32 %v1365, %v1354
    %v1367 = vmul.f32 %v1366, %v1365
    %v1368 = vmul.f32 0.5, %v1367
    %v1369 = vsub.f32 1.5, %v1368
    %v1370 = vmul.f32 %v1365, %v1369
    %vm1371 = vweird.f32 %v1354
    %vm1372 = vweird.f32 %v1365
    %vm1373 = vmor %vm1371, %vm1372
    %v1374 = vsel %vm1373, %v1365, %v1370
    %v1375 = vmul.f32 %v1341, %v1364
    %v1376 = vmul.f32 %v1342, %v1374
    %v1378 = vperm.slane %v1331, 0
    %v1380 = vmul.f32 %v1375, %v1378
    %v1381 = vmul.f32 %v1376, %v1378
    %v1383 = vperm.slane %v1332, 0
    %v1385 = vadd.f32 %v1380, %v1383
    %v1386 = vadd.f32 %v1381, %v1383
    %v1387 = vld [vmem:[%s24] sm:$0xff]
    %v1388 = vld [vmem:[%s24 + $0x8] sm:$0xff]
    %v1389 = vld [vmem:[%s24 + $0x10] sm:$0xff]
    %v1390 = vld [vmem:[%s24 + $0x18] sm:$0xff]
    %v1391 = vld [vmem:[%s25] sm:$0x1]
    %v1393 = vperm.slane %v1391, 0
    %v1396 = vsel %vm372, %v1385, 0
    %v1399 = vsel %vm372, %v1386, 0
    %1401 = vmatpush.msra.mxu0 0.0
    %1402 = vmatpush.msra.mxu0 0.0
    %1403 = vmatpush.msra.mxu0 0.0
    %1404 = vmatpush.msra.mxu0 0.0
    %1405 = vmatpush.msra.mxu0 0.0
    %1406 = vmatpush.msra.mxu0 0.0
    %1407 = vmatpush.msra.mxu0 0.0
    %1408 = vmatpush.msra.mxu0 0.0
    %1409 = vmatpush.msra.mxu0 0.0
    %1410 = vmatpush.msra.mxu0 0.0
    %1411 = vmatpush.msra.mxu0 0.0
    %1412 = vmatpush.msra.mxu0 0.0
    %1413 = vmatpush.msra.mxu0 %v1390
    %1414 = vmatpush.msra.mxu0 %v1389
    %1415 = vmatpush.msra.mxu0 %v1388
    %1416 = vmatpush.msra.mxu0 %v1387
    %1417 = vmatmul.f32.gmra.mxu0 %v1396
    %v1418 = vpop.f32.mrf.mxu0
    %v1419 = vadd.f32 %v1393, %v1418
    %1420 = vmatmul.f32.gmra.mxu0 %v1399
    %v1421 = vpop.f32.mrf.mxu0
    %v1422 = vadd.f32 %v1393, %v1421
    %1423 = vdwg.mxu0
    %v1424 = vmul.f32 %v1419, %v351
    %v1425 = vmul.f32 %v1422, %v356
    %vm1426 = vcmask 23552
    %1427 = vst.msk [vmem:[%s26] sm:$0xff] %vm1426, %v1424
    %1428 = vst.msk [vmem:[%s26 + $0x8] sm:$0xff] %vm1426, %v1425
    // Predicated region
    $region170: #{tpu_custom_call.1} parent=1 // pred_check
      _
    $region171: #{tpu_custom_call.1} parent=1 // pred_check_branch
      %1430 = sbr.rel (0) target = $region173
    $region172: #{tpu_custom_call.1} parent=1 // pred_region
      _
    $region173: #{tpu_custom_call.1} parent=1 // pred_fallthru
      _
    // Predicated region
    $region174: #{tpu_custom_call.1} parent=1 // pred_check
      _
    $region175: #{tpu_custom_call.1} parent=1 // pred_check_branch
      %1432 = sbr.rel (0) target = $region177
    $region176: #{tpu_custom_call.1} parent=1 // pred_region
      _
    $region177: #{tpu_custom_call.1} parent=1 // pred_fallthru
      _
    %1433 = vsyncpa [#allocation3], 1
    %1434 = vsyncpa [#allocation5], 1
    %1435 = vsyncpa [#allocation8], 1
    %1436 = vsyncpa [#allocation11], 1
    %1437 = vsyncpa [#allocation14], 1
    %1438 = vsyncpa [#allocation17], 1
    %1439 = vsyncpa [#allocation20], 1
    %1440 = vsyncpa [#allocation23], 1
    %1441 = vsyncpa [#allocation26], 1

</llo_original>
